<compile_context>
chip_gen: v6e
topology: v6e:2x2x1
jax: 0.10.0
libtpu: 0.0.40
codegen_flags: <defaults>
</compile_context>

<pallas_src>
import jax
import jax.numpy as jnp
from jax import lax
from jax.experimental import pallas as pl
from jax.experimental.pallas import tpu as pltpu


_P = 128  # padded per-gate lane width (one full vreg lane dimension)


def _struct_sem_emb_kernel(x_ref, wih_ref, bfold_ref, whh_ref, bhn_ref,
                           item_ref, wnh_ref, wni_ref, bn_ref, out_ref):
    """Hoisted-projection GRU recurrence + fused 'normalize' linear layer.

    Layout (all padded so every gate slice is a clean 128-lane block):
      x_ref     : (L, E)        word embeddings of the description
      wih_ref   : (E, 3P)       W_ih^T, gate g in lanes [g*P, g*P+H), zeros elsewhere
      bfold_ref : (1, 3P)       b_ih (+ b_hh for r,z gates), padded
      whh_ref   : (P, 3P)       W_hh^T, zero-padded rows >= H and lanes >= H per gate
      bhn_ref   : (1, P)        b_hh for the n gate only (stays inside r*(.))
      item_ref  : (1, E)        item embedding
      wnh_ref   : (P, E)        normalize_layer weight, hidden half (rows >= H zeroed)
      wni_ref   : (E, E)        normalize_layer weight, item half
      bn_ref    : (1, E)        normalize_layer bias
      out_ref   : (1, E)
    """
    L = x_ref.shape[0]
    P = whh_ref.shape[0]           # padded hidden width (128)

    # Hoisted input projection for ALL timesteps: one (L, E) x (E, 3P) matmul.
    gi_all = (jnp.dot(x_ref[...], wih_ref[...], preferred_element_type=jnp.float32)
              + bfold_ref[...])                                           # (L, 3P)

    b_hn = bhn_ref[...]                                                   # (1, P)

    # Statically unrolled GRU recurrence; exactly one MXU dot per step.
    h = jnp.zeros((1, P), jnp.float32)
    for t in range(L):
        gi_t = gi_all[t:t + 1, :]                                         # (1, 3P)
        gh = jnp.dot(h, whh_ref[...], preferred_element_type=jnp.float32) # (1, 3P)
        i_r, i_z, i_n = gi_t[:, 0:P], gi_t[:, P:2 * P], gi_t[:, 2 * P:3 * P]
        h_r, h_z, h_n = gh[:, 0:P], gh[:, P:2 * P], gh[:, 2 * P:3 * P]
        r = jax.nn.sigmoid(i_r + h_r)
        z = jax.nn.sigmoid(i_z + h_z)
        n = jnp.tanh(i_n + r * (h_n + b_hn))      # b_hn inside r*(.) per PyTorch GRU
        h = (1.0 - z) * n + z * h

    # Linear(cat([hidden, item])) == hidden @ W[:, :E].T + item @ W[:, E:].T + b
    out_ref[...] = (jnp.dot(h, wnh_ref[...], preferred_element_type=jnp.float32)
                    + jnp.dot(item_ref[...], wni_ref[...],
                              preferred_element_type=jnp.float32)
                    + bn_ref[...])                                        # (1, E)


def _pad_gate_cols(w_t, H, P=_P):
    """(in, 3H) -> (in, 3P): gate g's H columns placed at lanes [g*P, g*P+H)."""
    out = jnp.zeros((w_t.shape[0], 3 * P), jnp.float32)
    for g in range(3):
        out = out.at[:, g * P:g * P + H].set(w_t[:, g * H:(g + 1) * H])
    return out


def _pad_gate_vec(b, H, P=_P):
    """(3H,) -> (1, 3P) with the same per-gate placement."""
    out = jnp.zeros((1, 3 * P), jnp.float32)
    for g in range(3):
        out = out.at[0, g * P:g * P + H].set(b[g * H:(g + 1) * H])
    return out


def struct_sem_emb_forward(params, item_id, item_desc):
    E = params["emb_dim"]
    H = params["hidden_dim"]
    P = _P

    # --- glue: embedding gathers and weight re-layout (no heavy compute) -----------
    x = params["word_emb"][item_desc].astype(jnp.float32)                 # (L, E)
    item_emb = params["item_emb"][item_id][None, :].astype(jnp.float32)   # (1, E)

    w_ih_pad = _pad_gate_cols(params["w_ih"].T, H)                        # (E, 3P)
    whh_cols = _pad_gate_cols(params["w_hh"].T, H)                        # (H, 3P)
    w_hh_pad = jnp.zeros((P, 3 * P), jnp.float32).at[:H, :].set(whh_cols) # (P, 3P)

    # Fold r/z halves of b_hh into the hoisted bias; keep b_hn separate (inside r*(.)).
    b_ih, b_hh = params["b_ih"], params["b_hh"]
    b_rzn = jnp.concatenate([b_ih[:2 * H] + b_hh[:2 * H], b_ih[2 * H:]])  # (3H,)
    b_fold = _pad_gate_vec(b_rzn, H)                                      # (1, 3P)
    b_hn_pad = jnp.zeros((1, P), jnp.float32).at[0, :H].set(b_hh[2 * H:]) # (1, P)

    w_norm = params["w_norm"]                                             # (E, 2E)
    w_norm_h_pad = (jnp.zeros((P, E), jnp.float32)
                    .at[:H, :].set(w_norm[:, :E].T))                      # (P, E)
    w_norm_i = w_norm[:, E:].T.astype(jnp.float32)                        # (E, E)
    b_norm = params["b_norm"][None, :].astype(jnp.float32)                # (1, E)

    args = (x, w_ih_pad, b_fold, w_hh_pad, b_hn_pad,
            item_emb, w_norm_h_pad, w_norm_i, b_norm)

    def full_spec(a):
        # whole-array block (satisfies the (8,128) rule via the "full dims" exception)
        return pl.BlockSpec(a.shape, lambda i, n=a.ndim: (0,) * n)

    out2d = pl.pallas_call(
        _struct_sem_emb_kernel,
        out_shape=jax.ShapeDtypeStruct((1, E), jnp.float32),
        grid=(1,),
        in_specs=[full_spec(a) for a in args],
        out_specs=pl.BlockSpec((1, E), lambda i: (0, 0)),
        compiler_params=pltpu.CompilerParams(
            dimension_semantics=("arbitrary",)),
    )(*args)

    return out2d.reshape(E, 1, 1)                               # matches .view(E, 1, -1)


def _reference_forward(params, item_id, item_desc):
    """Pure-JAX reference replicating the PyTorch forward exactly."""
    E = params["emb_dim"]
    H = params["hidden_dim"]
    x = params["word_emb"][item_desc]
    w_ih, w_hh = params["w_ih"], params["w_hh"]
    b_ih, b_hh = params["b_ih"], params["b_hh"]

    def step(h, x_t):
        gi = x_t @ w_ih.T + b_ih
        gh = h @ w_hh.T + b_hh
        i_r, i_z, i_n = jnp.split(gi, 3)
        h_r, h_z, h_n = jnp.split(gh, 3)
        r = jax.nn.sigmoid(i_r + h_r)
        z = jax.nn.sigmoid(i_z + h_z)
        n = jnp.tanh(i_n + r * h_n)
        return (1.0 - z) * n + z * h, None

    h0 = jnp.zeros((H,), jnp.float32)
    hL, _ = lax.scan(step, h0, x)
    item = params["item_emb"][item_id]
    combined = jnp.concatenate([hL, item])
    out = combined @ params["w_norm"].T + params["b_norm"]
    return out.reshape(E, 1, 1)


def init_params(key, emb_dim, hidden_dim, item_num, user_num, vocab_size):
    """Deterministic synthetic parameters matching the module's __init__ shapes."""
    keys = jax.random.split(key, 9)
    kg = 1.0 / jnp.sqrt(hidden_dim)          # GRU init range
    kl = 1.0 / jnp.sqrt(2.0 * emb_dim)       # Linear init range
    return dict(
        emb_dim=emb_dim,
        hidden_dim=hidden_dim,
        item_emb=jax.random.normal(keys[0], (item_num, emb_dim), jnp.float32),
        user_emb=jax.random.normal(keys[1], (user_num, emb_dim), jnp.float32),  # unused in forward
        word_emb=jax.random.normal(keys[2], (vocab_size, emb_dim), jnp.float32),
        w_ih=jax.random.uniform(keys[3], (3 * hidden_dim, emb_dim), jnp.float32, -kg, kg),
        w_hh=jax.random.uniform(keys[4], (3 * hidden_dim, hidden_dim), jnp.float32, -kg, kg),
        b_ih=jax.random.uniform(keys[5], (3 * hidden_dim,), jnp.float32, -kg, kg),
        b_hh=jax.random.uniform(keys[6], (3 * hidden_dim,), jnp.float32, -kg, kg),
        w_norm=jax.random.uniform(keys[7], (emb_dim, 2 * emb_dim), jnp.float32, -kl, kl),
        b_norm=jax.random.uniform(keys[8], (emb_dim,), jnp.float32, -kl, kl),
    )


if __name__ == "__main__":
    emb_dim = 32
    hidden_dim = 32          # must equal emb_dim for the module's views to be consistent
    item_num, user_num, vocab_size, rating_range = 10, 7, 50, 5
    seq_len = 8

    key = jax.random.PRNGKey(0)
    pkey, dkey = jax.random.split(key)
    params = init_params(pkey, emb_dim, hidden_dim, item_num, user_num, vocab_size)

    item_desc = jax.random.randint(dkey, (seq_len,), 0, vocab_size)   # token ids
    item_id = 3

    out = struct_sem_emb_forward(params, item_id, item_desc)
    out = jax.block_until_ready(out)

    ref = _reference_forward(params, item_id, item_desc)
    assert out.shape == (emb_dim, 1, 1), out.shape
    assert jnp.allclose(out, ref, atol=1e-3, rtol=1e-3), float(jnp.max(jnp.abs(out - ref)))

    print("KERNEL_OK")
</pallas_src>

<mosaic_0001>
module attributes {stable_mosaic.version = 11 : i64} {
  func.func @_struct_sem_emb_kernel(%arg0: i32, %arg1: memref<8x32xf32, #tpu.memory_space<vmem>>, %arg2: memref<32x384xf32, #tpu.memory_space<vmem>>, %arg3: memref<1x384xf32, #tpu.memory_space<vmem>>, %arg4: memref<128x384xf32, #tpu.memory_space<vmem>>, %arg5: memref<1x128xf32, #tpu.memory_space<vmem>>, %arg6: memref<1x32xf32, #tpu.memory_space<vmem>>, %arg7: memref<128x32xf32, #tpu.memory_space<vmem>>, %arg8: memref<32x32xf32, #tpu.memory_space<vmem>>, %arg9: memref<1x32xf32, #tpu.memory_space<vmem>>, %arg10: memref<1x32xf32, #tpu.memory_space<vmem>>) attributes {dimension_semantics = [#tpu.dimension_semantics<arbitrary>], iteration_bounds = array<i64: 1>, scalar_prefetch = 0 : i64, scratch_operands = 0 : i64, tpu.core_type = #tpu.core_type<tc>, window_params = [{pipeline_mode = #tpu.pipeline_mode<synchronous>, transform_indices = @transform_0, window_bounds = array<i64: 8, 32>}, {pipeline_mode = #tpu.pipeline_mode<synchronous>, transform_indices = @transform_1, window_bounds = array<i64: 32, 384>}, {pipeline_mode = #tpu.pipeline_mode<synchronous>, transform_indices = @transform_2, window_bounds = array<i64: 1, 384>}, {pipeline_mode = #tpu.pipeline_mode<synchronous>, transform_indices = @transform_3, window_bounds = array<i64: 128, 384>}, {pipeline_mode = #tpu.pipeline_mode<synchronous>, transform_indices = @transform_4, window_bounds = array<i64: 1, 128>}, {pipeline_mode = #tpu.pipeline_mode<synchronous>, transform_indices = @transform_5, window_bounds = array<i64: 1, 32>}, {pipeline_mode = #tpu.pipeline_mode<synchronous>, transform_indices = @transform_6, window_bounds = array<i64: 128, 32>}, {pipeline_mode = #tpu.pipeline_mode<synchronous>, transform_indices = @transform_7, window_bounds = array<i64: 32, 32>}, {pipeline_mode = #tpu.pipeline_mode<synchronous>, transform_indices = @transform_8, window_bounds = array<i64: 1, 32>}, {pipeline_mode = #tpu.pipeline_mode<synchronous>, transform_indices = @transform_9, window_bounds = array<i64: 1, 32>}]} {
    %c0 = arith.constant 0 : index
    %c0_0 = arith.constant 0 : index
    %0 = vector.load %arg1[%c0, %c0_0] : memref<8x32xf32, #tpu.memory_space<vmem>>, vector<8x32xf32>
    %c0_1 = arith.constant 0 : index
    %c0_2 = arith.constant 0 : index
    %1 = vector.load %arg2[%c0_1, %c0_2] : memref<32x384xf32, #tpu.memory_space<vmem>>, vector<32x384xf32>
    %cst = arith.constant dense<0.000000e+00> : vector<8x384xf32>
    %2 = tpu.matmul %0, %1, %cst {dimension_numbers = #tpu.dot_dimension_numbers<[1], [0], [0], [1], [0, 0, 1, 1], [], []>} : vector<8x32xf32>, vector<32x384xf32>, vector<8x384xf32> -> vector<8x384xf32>
    %c0_3 = arith.constant 0 : index
    %c0_4 = arith.constant 0 : index
    %3 = vector.load %arg3[%c0_3, %c0_4] : memref<1x384xf32, #tpu.memory_space<vmem>>, vector<1x384xf32>
    %4 = vector.broadcast %3 : vector<1x384xf32> to vector<8x384xf32>
    %5 = arith.addf %2, %4 : vector<8x384xf32>
    %c0_5 = arith.constant 0 : index
    %c0_6 = arith.constant 0 : index
    %6 = vector.load %arg5[%c0_5, %c0_6] : memref<1x128xf32, #tpu.memory_space<vmem>>, vector<1x128xf32>
    %cst_7 = arith.constant 0.000000e+00 : f32
    %7 = vector.broadcast %cst_7 : f32 to vector<1x128xf32>
    %8 = vector.extract_strided_slice %5 {offsets = [0, 0], sizes = [1, 384], strides = [1, 1]} : vector<8x384xf32> to vector<1x384xf32>
    %c0_8 = arith.constant 0 : index
    %c0_9 = arith.constant 0 : index
    %9 = vector.load %arg4[%c0_8, %c0_9] : memref<128x384xf32, #tpu.memory_space<vmem>>, vector<128x384xf32>
    %cst_10 = arith.constant dense<0.000000e+00> : vector<1x384xf32>
    %10 = tpu.matmul %7, %9, %cst_10 {dimension_numbers = #tpu.dot_dimension_numbers<[1], [0], [0], [1], [0, 0, 1, 1], [], []>} : vector<1x128xf32>, vector<128x384xf32>, vector<1x384xf32> -> vector<1x384xf32>
    %11 = vector.extract_strided_slice %8 {offsets = [0, 0], sizes = [1, 128], strides = [1, 1]} : vector<1x384xf32> to vector<1x128xf32>
    %12 = vector.extract_strided_slice %8 {offsets = [0, 128], sizes = [1, 128], strides = [1, 1]} : vector<1x384xf32> to vector<1x128xf32>
    %13 = vector.extract_strided_slice %8 {offsets = [0, 256], sizes = [1, 128], strides = [1, 1]} : vector<1x384xf32> to vector<1x128xf32>
    %14 = vector.extract_strided_slice %10 {offsets = [0, 0], sizes = [1, 128], strides = [1, 1]} : vector<1x384xf32> to vector<1x128xf32>
    %15 = vector.extract_strided_slice %10 {offsets = [0, 128], sizes = [1, 128], strides = [1, 1]} : vector<1x384xf32> to vector<1x128xf32>
    %16 = vector.extract_strided_slice %10 {offsets = [0, 256], sizes = [1, 128], strides = [1, 1]} : vector<1x384xf32> to vector<1x128xf32>
    %17 = arith.addf %11, %14 : vector<1x128xf32>
    %18 = arith.negf %17 : vector<1x128xf32>
    %19 = math.exp %18 : vector<1x128xf32>
    %cst_11 = arith.constant 1.000000e+00 : f32
    %20 = vector.broadcast %cst_11 : f32 to vector<1x128xf32>
    %21 = arith.addf %20, %19 : vector<1x128xf32>
    %22 = arith.divf %20, %21 : vector<1x128xf32>
    %23 = arith.addf %12, %15 : vector<1x128xf32>
    %24 = arith.negf %23 : vector<1x128xf32>
    %25 = math.exp %24 : vector<1x128xf32>
    %cst_12 = arith.constant 1.000000e+00 : f32
    %26 = vector.broadcast %cst_12 : f32 to vector<1x128xf32>
    %27 = arith.addf %26, %25 : vector<1x128xf32>
    %28 = arith.divf %26, %27 : vector<1x128xf32>
    %29 = arith.addf %16, %6 : vector<1x128xf32>
    %30 = arith.mulf %22, %29 : vector<1x128xf32>
    %31 = arith.addf %13, %30 : vector<1x128xf32>
    %32 = math.tanh %31 : vector<1x128xf32>
    %cst_13 = arith.constant 1.000000e+00 : f32
    %33 = vector.broadcast %cst_13 : f32 to vector<1x128xf32>
    %34 = arith.subf %33, %28 : vector<1x128xf32>
    %35 = arith.mulf %34, %32 : vector<1x128xf32>
    %36 = arith.mulf %28, %7 : vector<1x128xf32>
    %37 = arith.addf %35, %36 : vector<1x128xf32>
    %38 = vector.extract_strided_slice %5 {offsets = [1, 0], sizes = [1, 384], strides = [1, 1]} : vector<8x384xf32> to vector<1x384xf32>
    %c0_14 = arith.constant 0 : index
    %c0_15 = arith.constant 0 : index
    %39 = vector.load %arg4[%c0_14, %c0_15] : memref<128x384xf32, #tpu.memory_space<vmem>>, vector<128x384xf32>
    %cst_16 = arith.constant dense<0.000000e+00> : vector<1x384xf32>
    %40 = tpu.matmul %37, %39, %cst_16 {dimension_numbers = #tpu.dot_dimension_numbers<[1], [0], [0], [1], [0, 0, 1, 1], [], []>} : vector<1x128xf32>, vector<128x384xf32>, vector<1x384xf32> -> vector<1x384xf32>
    %41 = vector.extract_strided_slice %38 {offsets = [0, 0], sizes = [1, 128], strides = [1, 1]} : vector<1x384xf32> to vector<1x128xf32>
    %42 = vector.extract_strided_slice %38 {offsets = [0, 128], sizes = [1, 128], strides = [1, 1]} : vector<1x384xf32> to vector<1x128xf32>
    %43 = vector.extract_strided_slice %38 {offsets = [0, 256], sizes = [1, 128], strides = [1, 1]} : vector<1x384xf32> to vector<1x128xf32>
    %44 = vector.extract_strided_slice %40 {offsets = [0, 0], sizes = [1, 128], strides = [1, 1]} : vector<1x384xf32> to vector<1x128xf32>
    %45 = vector.extract_strided_slice %40 {offsets = [0, 128], sizes = [1, 128], strides = [1, 1]} : vector<1x384xf32> to vector<1x128xf32>
    %46 = vector.extract_strided_slice %40 {offsets = [0, 256], sizes = [1, 128], strides = [1, 1]} : vector<1x384xf32> to vector<1x128xf32>
    %47 = arith.addf %41, %44 : vector<1x128xf32>
    %48 = arith.negf %47 : vector<1x128xf32>
    %49 = math.exp %48 : vector<1x128xf32>
    %cst_17 = arith.constant 1.000000e+00 : f32
    %50 = vector.broadcast %cst_17 : f32 to vector<1x128xf32>
    %51 = arith.addf %50, %49 : vector<1x128xf32>
    %52 = arith.divf %50, %51 : vector<1x128xf32>
    %53 = arith.addf %42, %45 : vector<1x128xf32>
    %54 = arith.negf %53 : vector<1x128xf32>
    %55 = math.exp %54 : vector<1x128xf32>
    %cst_18 = arith.constant 1.000000e+00 : f32
    %56 = vector.broadcast %cst_18 : f32 to vector<1x128xf32>
    %57 = arith.addf %56, %55 : vector<1x128xf32>
    %58 = arith.divf %56, %57 : vector<1x128xf32>
    %59 = arith.addf %46, %6 : vector<1x128xf32>
    %60 = arith.mulf %52, %59 : vector<1x128xf32>
    %61 = arith.addf %43, %60 : vector<1x128xf32>
    %62 = math.tanh %61 : vector<1x128xf32>
    %cst_19 = arith.constant 1.000000e+00 : f32
    %63 = vector.broadcast %cst_19 : f32 to vector<1x128xf32>
    %64 = arith.subf %63, %58 : vector<1x128xf32>
    %65 = arith.mulf %64, %62 : vector<1x128xf32>
    %66 = arith.mulf %58, %37 : vector<1x128xf32>
    %67 = arith.addf %65, %66 : vector<1x128xf32>
    %68 = vector.extract_strided_slice %5 {offsets = [2, 0], sizes = [1, 384], strides = [1, 1]} : vector<8x384xf32> to vector<1x384xf32>
    %c0_20 = arith.constant 0 : index
    %c0_21 = arith.constant 0 : index
    %69 = vector.load %arg4[%c0_20, %c0_21] : memref<128x384xf32, #tpu.memory_space<vmem>>, vector<128x384xf32>
    %cst_22 = arith.constant dense<0.000000e+00> : vector<1x384xf32>
    %70 = tpu.matmul %67, %69, %cst_22 {dimension_numbers = #tpu.dot_dimension_numbers<[1], [0], [0], [1], [0, 0, 1, 1], [], []>} : vector<1x128xf32>, vector<128x384xf32>, vector<1x384xf32> -> vector<1x384xf32>
    %71 = vector.extract_strided_slice %68 {offsets = [0, 0], sizes = [1, 128], strides = [1, 1]} : vector<1x384xf32> to vector<1x128xf32>
    %72 = vector.extract_strided_slice %68 {offsets = [0, 128], sizes = [1, 128], strides = [1, 1]} : vector<1x384xf32> to vector<1x128xf32>
    %73 = vector.extract_strided_slice %68 {offsets = [0, 256], sizes = [1, 128], strides = [1, 1]} : vector<1x384xf32> to vector<1x128xf32>
    %74 = vector.extract_strided_slice %70 {offsets = [0, 0], sizes = [1, 128], strides = [1, 1]} : vector<1x384xf32> to vector<1x128xf32>
    %75 = vector.extract_strided_slice %70 {offsets = [0, 128], sizes = [1, 128], strides = [1, 1]} : vector<1x384xf32> to vector<1x128xf32>
    %76 = vector.extract_strided_slice %70 {offsets = [0, 256], sizes = [1, 128], strides = [1, 1]} : vector<1x384xf32> to vector<1x128xf32>
    %77 = arith.addf %71, %74 : vector<1x128xf32>
    %78 = arith.negf %77 : vector<1x128xf32>
    %79 = math.exp %78 : vector<1x128xf32>
    %cst_23 = arith.constant 1.000000e+00 : f32
    %80 = vector.broadcast %cst_23 : f32 to vector<1x128xf32>
    %81 = arith.addf %80, %79 : vector<1x128xf32>
    %82 = arith.divf %80, %81 : vector<1x128xf32>
    %83 = arith.addf %72, %75 : vector<1x128xf32>
    %84 = arith.negf %83 : vector<1x128xf32>
    %85 = math.exp %84 : vector<1x128xf32>
    %cst_24 = arith.constant 1.000000e+00 : f32
    %86 = vector.broadcast %cst_24 : f32 to vector<1x128xf32>
    %87 = arith.addf %86, %85 : vector<1x128xf32>
    %88 = arith.divf %86, %87 : vector<1x128xf32>
    %89 = arith.addf %76, %6 : vector<1x128xf32>
    %90 = arith.mulf %82, %89 : vector<1x128xf32>
    %91 = arith.addf %73, %90 : vector<1x128xf32>
    %92 = math.tanh %91 : vector<1x128xf32>
    %cst_25 = arith.constant 1.000000e+00 : f32
    %93 = vector.broadcast %cst_25 : f32 to vector<1x128xf32>
    %94 = arith.subf %93, %88 : vector<1x128xf32>
    %95 = arith.mulf %94, %92 : vector<1x128xf32>
    %96 = arith.mulf %88, %67 : vector<1x128xf32>
    %97 = arith.addf %95, %96 : vector<1x128xf32>
    %98 = vector.extract_strided_slice %5 {offsets = [3, 0], sizes = [1, 384], strides = [1, 1]} : vector<8x384xf32> to vector<1x384xf32>
    %c0_26 = arith.constant 0 : index
    %c0_27 = arith.constant 0 : index
    %99 = vector.load %arg4[%c0_26, %c0_27] : memref<128x384xf32, #tpu.memory_space<vmem>>, vector<128x384xf32>
    %cst_28 = arith.constant dense<0.000000e+00> : vector<1x384xf32>
    %100 = tpu.matmul %97, %99, %cst_28 {dimension_numbers = #tpu.dot_dimension_numbers<[1], [0], [0], [1], [0, 0, 1, 1], [], []>} : vector<1x128xf32>, vector<128x384xf32>, vector<1x384xf32> -> vector<1x384xf32>
    %101 = vector.extract_strided_slice %98 {offsets = [0, 0], sizes = [1, 128], strides = [1, 1]} : vector<1x384xf32> to vector<1x128xf32>
    %102 = vector.extract_strided_slice %98 {offsets = [0, 128], sizes = [1, 128], strides = [1, 1]} : vector<1x384xf32> to vector<1x128xf32>
    %103 = vector.extract_strided_slice %98 {offsets = [0, 256], sizes = [1, 128], strides = [1, 1]} : vector<1x384xf32> to vector<1x128xf32>
    %104 = vector.extract_strided_slice %100 {offsets = [0, 0], sizes = [1, 128], strides = [1, 1]} : vector<1x384xf32> to vector<1x128xf32>
    %105 = vector.extract_strided_slice %100 {offsets = [0, 128], sizes = [1, 128], strides = [1, 1]} : vector<1x384xf32> to vector<1x128xf32>
    %106 = vector.extract_strided_slice %100 {offsets = [0, 256], sizes = [1, 128], strides = [1, 1]} : vector<1x384xf32> to vector<1x128xf32>
    %107 = arith.addf %101, %104 : vector<1x128xf32>
    %108 = arith.negf %107 : vector<1x128xf32>
    %109 = math.exp %108 : vector<1x128xf32>
    %cst_29 = arith.constant 1.000000e+00 : f32
    %110 = vector.broadcast %cst_29 : f32 to vector<1x128xf32>
    %111 = arith.addf %110, %109 : vector<1x128xf32>
    %112 = arith.divf %110, %111 : vector<1x128xf32>
    %113 = arith.addf %102, %105 : vector<1x128xf32>
    %114 = arith.negf %113 : vector<1x128xf32>
    %115 = math.exp %114 : vector<1x128xf32>
    %cst_30 = arith.constant 1.000000e+00 : f32
    %116 = vector.broadcast %cst_30 : f32 to vector<1x128xf32>
    %117 = arith.addf %116, %115 : vector<1x128xf32>
    %118 = arith.divf %116, %117 : vector<1x128xf32>
    %119 = arith.addf %106, %6 : vector<1x128xf32>
    %120 = arith.mulf %112, %119 : vector<1x128xf32>
    %121 = arith.addf %103, %120 : vector<1x128xf32>
    %122 = math.tanh %121 : vector<1x128xf32>
    %cst_31 = arith.constant 1.000000e+00 : f32
    %123 = vector.broadcast %cst_31 : f32 to vector<1x128xf32>
    %124 = arith.subf %123, %118 : vector<1x128xf32>
    %125 = arith.mulf %124, %122 : vector<1x128xf32>
    %126 = arith.mulf %118, %97 : vector<1x128xf32>
    %127 = arith.addf %125, %126 : vector<1x128xf32>
    %128 = vector.extract_strided_slice %5 {offsets = [4, 0], sizes = [1, 384], strides = [1, 1]} : vector<8x384xf32> to vector<1x384xf32>
    %c0_32 = arith.constant 0 : index
    %c0_33 = arith.constant 0 : index
    %129 = vector.load %arg4[%c0_32, %c0_33] : memref<128x384xf32, #tpu.memory_space<vmem>>, vector<128x384xf32>
    %cst_34 = arith.constant dense<0.000000e+00> : vector<1x384xf32>
    %130 = tpu.matmul %127, %129, %cst_34 {dimension_numbers = #tpu.dot_dimension_numbers<[1], [0], [0], [1], [0, 0, 1, 1], [], []>} : vector<1x128xf32>, vector<128x384xf32>, vector<1x384xf32> -> vector<1x384xf32>
    %131 = vector.extract_strided_slice %128 {offsets = [0, 0], sizes = [1, 128], strides = [1, 1]} : vector<1x384xf32> to vector<1x128xf32>
    %132 = vector.extract_strided_slice %128 {offsets = [0, 128], sizes = [1, 128], strides = [1, 1]} : vector<1x384xf32> to vector<1x128xf32>
    %133 = vector.extract_strided_slice %128 {offsets = [0, 256], sizes = [1, 128], strides = [1, 1]} : vector<1x384xf32> to vector<1x128xf32>
    %134 = vector.extract_strided_slice %130 {offsets = [0, 0], sizes = [1, 128], strides = [1, 1]} : vector<1x384xf32> to vector<1x128xf32>
    %135 = vector.extract_strided_slice %130 {offsets = [0, 128], sizes = [1, 128], strides = [1, 1]} : vector<1x384xf32> to vector<1x128xf32>
    %136 = vector.extract_strided_slice %130 {offsets = [0, 256], sizes = [1, 128], strides = [1, 1]} : vector<1x384xf32> to vector<1x128xf32>
    %137 = arith.addf %131, %134 : vector<1x128xf32>
    %138 = arith.negf %137 : vector<1x128xf32>
    %139 = math.exp %138 : vector<1x128xf32>
    %cst_35 = arith.constant 1.000000e+00 : f32
    %140 = vector.broadcast %cst_35 : f32 to vector<1x128xf32>
    %141 = arith.addf %140, %139 : vector<1x128xf32>
    %142 = arith.divf %140, %141 : vector<1x128xf32>
    %143 = arith.addf %132, %135 : vector<1x128xf32>
    %144 = arith.negf %143 : vector<1x128xf32>
    %145 = math.exp %144 : vector<1x128xf32>
    %cst_36 = arith.constant 1.000000e+00 : f32
    %146 = vector.broadcast %cst_36 : f32 to vector<1x128xf32>
    %147 = arith.addf %146, %145 : vector<1x128xf32>
    %148 = arith.divf %146, %147 : vector<1x128xf32>
    %149 = arith.addf %136, %6 : vector<1x128xf32>
    %150 = arith.mulf %142, %149 : vector<1x128xf32>
    %151 = arith.addf %133, %150 : vector<1x128xf32>
    %152 = math.tanh %151 : vector<1x128xf32>
    %cst_37 = arith.constant 1.000000e+00 : f32
    %153 = vector.broadcast %cst_37 : f32 to vector<1x128xf32>
    %154 = arith.subf %153, %148 : vector<1x128xf32>
    %155 = arith.mulf %154, %152 : vector<1x128xf32>
    %156 = arith.mulf %148, %127 : vector<1x128xf32>
    %157 = arith.addf %155, %156 : vector<1x128xf32>
    %158 = vector.extract_strided_slice %5 {offsets = [5, 0], sizes = [1, 384], strides = [1, 1]} : vector<8x384xf32> to vector<1x384xf32>
    %c0_38 = arith.constant 0 : index
    %c0_39 = arith.constant 0 : index
    %159 = vector.load %arg4[%c0_38, %c0_39] : memref<128x384xf32, #tpu.memory_space<vmem>>, vector<128x384xf32>
    %cst_40 = arith.constant dense<0.000000e+00> : vector<1x384xf32>
    %160 = tpu.matmul %157, %159, %cst_40 {dimension_numbers = #tpu.dot_dimension_numbers<[1], [0], [0], [1], [0, 0, 1, 1], [], []>} : vector<1x128xf32>, vector<128x384xf32>, vector<1x384xf32> -> vector<1x384xf32>
    %161 = vector.extract_strided_slice %158 {offsets = [0, 0], sizes = [1, 128], strides = [1, 1]} : vector<1x384xf32> to vector<1x128xf32>
    %162 = vector.extract_strided_slice %158 {offsets = [0, 128], sizes = [1, 128], strides = [1, 1]} : vector<1x384xf32> to vector<1x128xf32>
    %163 = vector.extract_strided_slice %158 {offsets = [0, 256], sizes = [1, 128], strides = [1, 1]} : vector<1x384xf32> to vector<1x128xf32>
    %164 = vector.extract_strided_slice %160 {offsets = [0, 0], sizes = [1, 128], strides = [1, 1]} : vector<1x384xf32> to vector<1x128xf32>
    %165 = vector.extract_strided_slice %160 {offsets = [0, 128], sizes = [1, 128], strides = [1, 1]} : vector<1x384xf32> to vector<1x128xf32>
    %166 = vector.extract_strided_slice %160 {offsets = [0, 256], sizes = [1, 128], strides = [1, 1]} : vector<1x384xf32> to vector<1x128xf32>
    %167 = arith.addf %161, %164 : vector<1x128xf32>
    %168 = arith.negf %167 : vector<1x128xf32>
    %169 = math.exp %168 : vector<1x128xf32>
    %cst_41 = arith.constant 1.000000e+00 : f32
    %170 = vector.broadcast %cst_41 : f32 to vector<1x128xf32>
    %171 = arith.addf %170, %169 : vector<1x128xf32>
    %172 = arith.divf %170, %171 : vector<1x128xf32>
    %173 = arith.addf %162, %165 : vector<1x128xf32>
    %174 = arith.negf %173 : vector<1x128xf32>
    %175 = math.exp %174 : vector<1x128xf32>
    %cst_42 = arith.constant 1.000000e+00 : f32
    %176 = vector.broadcast %cst_42 : f32 to vector<1x128xf32>
    %177 = arith.addf %176, %175 : vector<1x128xf32>
    %178 = arith.divf %176, %177 : vector<1x128xf32>
    %179 = arith.addf %166, %6 : vector<1x128xf32>
    %180 = arith.mulf %172, %179 : vector<1x128xf32>
    %181 = arith.addf %163, %180 : vector<1x128xf32>
    %182 = math.tanh %181 : vector<1x128xf32>
    %cst_43 = arith.constant 1.000000e+00 : f32
    %183 = vector.broadcast %cst_43 : f32 to vector<1x128xf32>
    %184 = arith.subf %183, %178 : vector<1x128xf32>
    %185 = arith.mulf %184, %182 : vector<1x128xf32>
    %186 = arith.mulf %178, %157 : vector<1x128xf32>
    %187 = arith.addf %185, %186 : vector<1x128xf32>
    %188 = vector.extract_strided_slice %5 {offsets = [6, 0], sizes = [1, 384], strides = [1, 1]} : vector<8x384xf32> to vector<1x384xf32>
    %c0_44 = arith.constant 0 : index
    %c0_45 = arith.constant 0 : index
    %189 = vector.load %arg4[%c0_44, %c0_45] : memref<128x384xf32, #tpu.memory_space<vmem>>, vector<128x384xf32>
    %cst_46 = arith.constant dense<0.000000e+00> : vector<1x384xf32>
    %190 = tpu.matmul %187, %189, %cst_46 {dimension_numbers = #tpu.dot_dimension_numbers<[1], [0], [0], [1], [0, 0, 1, 1], [], []>} : vector<1x128xf32>, vector<128x384xf32>, vector<1x384xf32> -> vector<1x384xf32>
    %191 = vector.extract_strided_slice %188 {offsets = [0, 0], sizes = [1, 128], strides = [1, 1]} : vector<1x384xf32> to vector<1x128xf32>
    %192 = vector.extract_strided_slice %188 {offsets = [0, 128], sizes = [1, 128], strides = [1, 1]} : vector<1x384xf32> to vector<1x128xf32>
    %193 = vector.extract_strided_slice %188 {offsets = [0, 256], sizes = [1, 128], strides = [1, 1]} : vector<1x384xf32> to vector<1x128xf32>
    %194 = vector.extract_strided_slice %190 {offsets = [0, 0], sizes = [1, 128], strides = [1, 1]} : vector<1x384xf32> to vector<1x128xf32>
    %195 = vector.extract_strided_slice %190 {offsets = [0, 128], sizes = [1, 128], strides = [1, 1]} : vector<1x384xf32> to vector<1x128xf32>
    %196 = vector.extract_strided_slice %190 {offsets = [0, 256], sizes = [1, 128], strides = [1, 1]} : vector<1x384xf32> to vector<1x128xf32>
    %197 = arith.addf %191, %194 : vector<1x128xf32>
    %198 = arith.negf %197 : vector<1x128xf32>
    %199 = math.exp %198 : vector<1x128xf32>
    %cst_47 = arith.constant 1.000000e+00 : f32
    %200 = vector.broadcast %cst_47 : f32 to vector<1x128xf32>
    %201 = arith.addf %200, %199 : vector<1x128xf32>
    %202 = arith.divf %200, %201 : vector<1x128xf32>
    %203 = arith.addf %192, %195 : vector<1x128xf32>
    %204 = arith.negf %203 : vector<1x128xf32>
    %205 = math.exp %204 : vector<1x128xf32>
    %cst_48 = arith.constant 1.000000e+00 : f32
    %206 = vector.broadcast %cst_48 : f32 to vector<1x128xf32>
    %207 = arith.addf %206, %205 : vector<1x128xf32>
    %208 = arith.divf %206, %207 : vector<1x128xf32>
    %209 = arith.addf %196, %6 : vector<1x128xf32>
    %210 = arith.mulf %202, %209 : vector<1x128xf32>
    %211 = arith.addf %193, %210 : vector<1x128xf32>
    %212 = math.tanh %211 : vector<1x128xf32>
    %cst_49 = arith.constant 1.000000e+00 : f32
    %213 = vector.broadcast %cst_49 : f32 to vector<1x128xf32>
    %214 = arith.subf %213, %208 : vector<1x128xf32>
    %215 = arith.mulf %214, %212 : vector<1x128xf32>
    %216 = arith.mulf %208, %187 : vector<1x128xf32>
    %217 = arith.addf %215, %216 : vector<1x128xf32>
    %218 = vector.extract_strided_slice %5 {offsets = [7, 0], sizes = [1, 384], strides = [1, 1]} : vector<8x384xf32> to vector<1x384xf32>
    %c0_50 = arith.constant 0 : index
    %c0_51 = arith.constant 0 : index
    %219 = vector.load %arg4[%c0_50, %c0_51] : memref<128x384xf32, #tpu.memory_space<vmem>>, vector<128x384xf32>
    %cst_52 = arith.constant dense<0.000000e+00> : vector<1x384xf32>
    %220 = tpu.matmul %217, %219, %cst_52 {dimension_numbers = #tpu.dot_dimension_numbers<[1], [0], [0], [1], [0, 0, 1, 1], [], []>} : vector<1x128xf32>, vector<128x384xf32>, vector<1x384xf32> -> vector<1x384xf32>
    %221 = vector.extract_strided_slice %218 {offsets = [0, 0], sizes = [1, 128], strides = [1, 1]} : vector<1x384xf32> to vector<1x128xf32>
    %222 = vector.extract_strided_slice %218 {offsets = [0, 128], sizes = [1, 128], strides = [1, 1]} : vector<1x384xf32> to vector<1x128xf32>
    %223 = vector.extract_strided_slice %218 {offsets = [0, 256], sizes = [1, 128], strides = [1, 1]} : vector<1x384xf32> to vector<1x128xf32>
    %224 = vector.extract_strided_slice %220 {offsets = [0, 0], sizes = [1, 128], strides = [1, 1]} : vector<1x384xf32> to vector<1x128xf32>
    %225 = vector.extract_strided_slice %220 {offsets = [0, 128], sizes = [1, 128], strides = [1, 1]} : vector<1x384xf32> to vector<1x128xf32>
    %226 = vector.extract_strided_slice %220 {offsets = [0, 256], sizes = [1, 128], strides = [1, 1]} : vector<1x384xf32> to vector<1x128xf32>
    %227 = arith.addf %221, %224 : vector<1x128xf32>
    %228 = arith.negf %227 : vector<1x128xf32>
    %229 = math.exp %228 : vector<1x128xf32>
    %cst_53 = arith.constant 1.000000e+00 : f32
    %230 = vector.broadcast %cst_53 : f32 to vector<1x128xf32>
    %231 = arith.addf %230, %229 : vector<1x128xf32>
    %232 = arith.divf %230, %231 : vector<1x128xf32>
    %233 = arith.addf %222, %225 : vector<1x128xf32>
    %234 = arith.negf %233 : vector<1x128xf32>
    %235 = math.exp %234 : vector<1x128xf32>
    %cst_54 = arith.constant 1.000000e+00 : f32
    %236 = vector.broadcast %cst_54 : f32 to vector<1x128xf32>
    %237 = arith.addf %236, %235 : vector<1x128xf32>
    %238 = arith.divf %236, %237 : vector<1x128xf32>
    %239 = arith.addf %226, %6 : vector<1x128xf32>
    %240 = arith.mulf %232, %239 : vector<1x128xf32>
    %241 = arith.addf %223, %240 : vector<1x128xf32>
    %242 = math.tanh %241 : vector<1x128xf32>
    %cst_55 = arith.constant 1.000000e+00 : f32
    %243 = vector.broadcast %cst_55 : f32 to vector<1x128xf32>
    %244 = arith.subf %243, %238 : vector<1x128xf32>
    %245 = arith.mulf %244, %242 : vector<1x128xf32>
    %246 = arith.mulf %238, %217 : vector<1x128xf32>
    %247 = arith.addf %245, %246 : vector<1x128xf32>
    %c0_56 = arith.constant 0 : index
    %c0_57 = arith.constant 0 : index
    %248 = vector.load %arg7[%c0_56, %c0_57] : memref<128x32xf32, #tpu.memory_space<vmem>>, vector<128x32xf32>
    %cst_58 = arith.constant dense<0.000000e+00> : vector<1x32xf32>
    %249 = tpu.matmul %247, %248, %cst_58 {dimension_numbers = #tpu.dot_dimension_numbers<[1], [0], [0], [1], [0, 0, 1, 1], [], []>} : vector<1x128xf32>, vector<128x32xf32>, vector<1x32xf32> -> vector<1x32xf32>
    %c0_59 = arith.constant 0 : index
    %c0_60 = arith.constant 0 : index
    %250 = vector.load %arg6[%c0_59, %c0_60] : memref<1x32xf32, #tpu.memory_space<vmem>>, vector<1x32xf32>
    %c0_61 = arith.constant 0 : index
    %c0_62 = arith.constant 0 : index
    %251 = vector.load %arg8[%c0_61, %c0_62] : memref<32x32xf32, #tpu.memory_space<vmem>>, vector<32x32xf32>
    %cst_63 = arith.constant dense<0.000000e+00> : vector<1x32xf32>
    %252 = tpu.matmul %250, %251, %cst_63 {dimension_numbers = #tpu.dot_dimension_numbers<[1], [0], [0], [1], [0, 0, 1, 1], [], []>} : vector<1x32xf32>, vector<32x32xf32>, vector<1x32xf32> -> vector<1x32xf32>
    %253 = arith.addf %249, %252 : vector<1x32xf32>
    %c0_64 = arith.constant 0 : index
    %c0_65 = arith.constant 0 : index
    %254 = vector.load %arg9[%c0_64, %c0_65] : memref<1x32xf32, #tpu.memory_space<vmem>>, vector<1x32xf32>
    %255 = arith.addf %253, %254 : vector<1x32xf32>
    %c0_66 = arith.constant 0 : index
    %c0_67 = arith.constant 0 : index
    %256 = vector.load %arg10[%c0_66, %c0_67] : memref<1x32xf32, #tpu.memory_space<vmem>>, vector<1x32xf32>
    tpu.vector_store %arg10[%c0_66, %c0_67], %255 {strides = array<i32>} : memref<1x32xf32, #tpu.memory_space<vmem>>, vector<1x32xf32>,
    return
  }
  func.func @transform_0(%arg0: i32) -> (i32, i32) {
    %c0_i32 = arith.constant 0 : i32
    %c0_i32_0 = arith.constant 0 : i32
    %c0_i32_1 = arith.constant 0 : i32
    return %c0_i32, %c0_i32_0 : i32, i32
  }
  func.func @transform_1(%arg0: i32) -> (i32, i32) {
    %c0_i32 = arith.constant 0 : i32
    %c0_i32_0 = arith.constant 0 : i32
    %c0_i32_1 = arith.constant 0 : i32
    return %c0_i32, %c0_i32_0 : i32, i32
  }
  func.func @transform_2(%arg0: i32) -> (i32, i32) {
    %c0_i32 = arith.constant 0 : i32
    %c0_i32_0 = arith.constant 0 : i32
    %c0_i32_1 = arith.constant 0 : i32
    return %c0_i32, %c0_i32_0 : i32, i32
  }
  func.func @transform_3(%arg0: i32) -> (i32, i32) {
    %c0_i32 = arith.constant 0 : i32
    %c0_i32_0 = arith.constant 0 : i32
    %c0_i32_1 = arith.constant 0 : i32
    return %c0_i32, %c0_i32_0 : i32, i32
  }
  func.func @transform_4(%arg0: i32) -> (i32, i32) {
    %c0_i32 = arith.constant 0 : i32
    %c0_i32_0 = arith.constant 0 : i32
    %c0_i32_1 = arith.constant 0 : i32
    return %c0_i32, %c0_i32_0 : i32, i32
  }
  func.func @transform_5(%arg0: i32) -> (i32, i32) {
    %c0_i32 = arith.constant 0 : i32
    %c0_i32_0 = arith.constant 0 : i32
    %c0_i32_1 = arith.constant 0 : i32
    return %c0_i32, %c0_i32_0 : i32, i32
  }
  func.func @transform_6(%arg0: i32) -> (i32, i32) {
    %c0_i32 = arith.constant 0 : i32
    %c0_i32_0 = arith.constant 0 : i32
    %c0_i32_1 = arith.constant 0 : i32
    return %c0_i32, %c0_i32_0 : i32, i32
  }
  func.func @transform_7(%arg0: i32) -> (i32, i32) {
    %c0_i32 = arith.constant 0 : i32
    %c0_i32_0 = arith.constant 0 : i32
    %c0_i32_1 = arith.constant 0 : i32
    return %c0_i32, %c0_i32_0 : i32, i32
  }
  func.func @transform_8(%arg0: i32) -> (i32, i32) {
    %c0_i32 = arith.constant 0 : i32
    %c0_i32_0 = arith.constant 0 : i32
    %c0_i32_1 = arith.constant 0 : i32
    return %c0_i32, %c0_i32_0 : i32, i32
  }
  func.func @transform_9(%arg0: i32) -> (i32, i32) {
    %c0_i32 = arith.constant 0 : i32
    %c0_i32_0 = arith.constant 0 : i32
    %c0_i32_1 = arith.constant 0 : i32
    return %c0_i32, %c0_i32_0 : i32, i32
  }
}

</mosaic_0001>

<llo_original>
// kernel: tpu_custom_call.1
$region0: #{tpu_custom_call.1}
  #allocation0 [shape = 'u32[]', space=smem, size = 0x4, offset = 0x4, fixed_abs, tag = 'smem constant byte address 0x4 - core index']
  #allocation1 [shape = 'u32[144,128]{1,0:T(1,128)}', space=vmem, size = 0x12000, scoped, tag = 'internal scratch']
  %s0 = inlined_call_operand.vmem [shape: f32[8,32], index: 0, kind: input, shape index: {}]
  %s1 = inlined_call_operand.vmem [shape: f32[32,384], index: 1, kind: input, shape index: {}]
  %s2 = inlined_call_operand.vmem [shape: f32[1,384], index: 2, kind: input, shape index: {}]
  %s3 = inlined_call_operand.hbm [shape: f32[128,384], index: 3, kind: input, shape index: {}]
  %s4 = inlined_call_operand.vmem [shape: f32[1,128], index: 4, kind: input, shape index: {}]
  %s5 = inlined_call_operand.vmem [shape: f32[1,32], index: 5, kind: input, shape index: {}]
  %s6 = inlined_call_operand.vmem [shape: f32[128,32], index: 6, kind: input, shape index: {}]
  %s7 = inlined_call_operand.vmem [shape: f32[32,32], index: 7, kind: input, shape index: {}]
  %s8 = inlined_call_operand.vmem [shape: f32[1,32], index: 8, kind: input, shape index: {}]
  %s9 = inlined_call_operand.hbm [shape: f32[1,32], index: 9, kind: output, shape index: {}]
  %s10 = sld [smem:[#allocation0]]
  $region50: #{tpu_custom_call.1} parent=0
    _
  %s12 = ssub.s32 1, %s10
  %s13 = scalar_select 0, %s12, %s10
  $region1: #{tpu_custom_call.1} parent=0
    #allocation2 [shape = 'u8[196608]{0}', space=vmem, size = 0x30000, scoped, tag = 'input window, operand 3, single buffered']
    #allocation3 [shape = 's32[1]{0}', space=sflag, size = 0x4, scoped, tag = 'scoped memory for tpu_custom_call.1']
    #allocation4 [shape = 's32[1]{0}', space=sflag, size = 0x4, scoped, tag = 'scoped memory for tpu_custom_call.1']
    #allocation5 [shape = 'u8[512]{0}', space=vmem, size = 0x400, scoped, tag = 'output window, operand 0, single buffered']
    %14 = vsyncpa [#allocation3], 0
    %15 = vsyncpa [#allocation4], 0
    // Predicated region
    $region2: #{tpu_custom_call.1} parent=1 // pred_check
      _
    $region3: #{tpu_custom_call.1} parent=1 // pred_check_branch
      %17 = sbr.rel (0) target = $region5
    $region4: #{tpu_custom_call.1} parent=1 // pred_region
      _
    $region5: #{tpu_custom_call.1} parent=1 // pred_fallthru
      _
    // Predicated region
    $region6: #{tpu_custom_call.1} parent=1 // pred_check
      _
    $region7: #{tpu_custom_call.1} parent=1 // pred_check_branch
      %19 = sbr.rel (0) target = $region9
    $region8: #{tpu_custom_call.1} parent=1 // pred_region
      _
    $region9: #{tpu_custom_call.1} parent=1 // pred_fallthru
      _
    // Predicated region
    $region10: #{tpu_custom_call.1} parent=1 // pred_check
      _
    $region11: #{tpu_custom_call.1} parent=1 // pred_check_branch
      %21 = sbr.rel (0) target = $region13
    $region12: #{tpu_custom_call.1} parent=1 // pred_region
      _
    $region13: #{tpu_custom_call.1} parent=1 // pred_fallthru
      _
    // Predicated region
    $region14: #{tpu_custom_call.1} parent=1 // pred_check
      _
    $region15: #{tpu_custom_call.1} parent=1 // pred_check_branch
      %23 = sbr.rel (0) target = $region17
    $region16: #{tpu_custom_call.1} parent=1 // pred_region
      %s25 = ssub.s32 6144, 6144
      %26 = vsyncadd [#allocation3], %s25
      %s27 = sshll.u32 [#allocation2], 4
      %s28 = int_to_ptr.vmem [resolvable:$true] %s27
      %33 = dma.hbm_to_vmem [thread:$0]  %s3, 6144, %s28, [#allocation3], 384, 384, 24
    $region17: #{tpu_custom_call.1} parent=1 // pred_fallthru
      _
    // Predicated region
    $region18: #{tpu_custom_call.1} parent=1 // pred_check
      _
    $region19: #{tpu_custom_call.1} parent=1 // pred_check_branch
      %35 = sbr.rel (0) target = $region21
    $region20: #{tpu_custom_call.1} parent=1 // pred_region
      _
    $region21: #{tpu_custom_call.1} parent=1 // pred_fallthru
      _
    // Predicated region
    $region22: #{tpu_custom_call.1} parent=1 // pred_check
      _
    $region23: #{tpu_custom_call.1} parent=1 // pred_check_branch
      %37 = sbr.rel (0) target = $region25
    $region24: #{tpu_custom_call.1} parent=1 // pred_region
      _
    $region25: #{tpu_custom_call.1} parent=1 // pred_fallthru
      _
    // Predicated region
    $region26: #{tpu_custom_call.1} parent=1 // pred_check
      _
    $region27: #{tpu_custom_call.1} parent=1 // pred_check_branch
      %39 = sbr.rel (0) target = $region29
    $region28: #{tpu_custom_call.1} parent=1 // pred_region
      _
    $region29: #{tpu_custom_call.1} parent=1 // pred_fallthru
      _
    // Predicated region
    $region30: #{tpu_custom_call.1} parent=1 // pred_check
      _
    $region31: #{tpu_custom_call.1} parent=1 // pred_check_branch
      %41 = sbr.rel (0) target = $region33
    $region32: #{tpu_custom_call.1} parent=1 // pred_region
      _
    $region33: #{tpu_custom_call.1} parent=1 // pred_fallthru
      _
    // Predicated region
    $region34: #{tpu_custom_call.1} parent=1 // pred_check
      _
    $region35: #{tpu_custom_call.1} parent=1 // pred_check_branch
      %43 = sbr.rel (0) target = $region37
    $region36: #{tpu_custom_call.1} parent=1 // pred_region
      _
    $region37: #{tpu_custom_call.1} parent=1 // pred_fallthru
      _
    // Predicated region
    $region38: #{tpu_custom_call.1} parent=1 // pred_check
      _
    $region39: #{tpu_custom_call.1} parent=1 // pred_check_branch
      %45 = sbr.rel (0) target = $region41
    $region40: #{tpu_custom_call.1} parent=1 // pred_region
      %46 = dma.done [#allocation3], 6144
    $region41: #{tpu_custom_call.1} parent=1 // pred_fallthru
      _
    %v47 = vld [vmem:[%s0] sm:$0xff]
    %v48 = vld [vmem:[%s1] sm:$0xff]
    %v49 = vld [vmem:[%s1 + $0x8] sm:$0xff]
    %v50 = vld [vmem:[%s1 + $0x10] sm:$0xff]
    %v51 = vld [vmem:[%s1 + $0x18] sm:$0xff]
    %v52 = vld [vmem:[%s1 + $0x20] sm:$0xff]
    %v53 = vld [vmem:[%s1 + $0x28] sm:$0xff]
    %v54 = vld [vmem:[%s1 + $0x30] sm:$0xff]
    %v55 = vld [vmem:[%s1 + $0x38] sm:$0xff]
    %v56 = vld [vmem:[%s1 + $0x40] sm:$0xff]
    %v57 = vld [vmem:[%s1 + $0x48] sm:$0xff]
    %v58 = vld [vmem:[%s1 + $0x50] sm:$0xff]
    %v59 = vld [vmem:[%s1 + $0x58] sm:$0xff]
    %v60 = vld [vmem:[%s2] sm:$0x7]
    %v62 = vlaneseq
    %v63 = vshrl.u32 %v62, 7
    %v64 = vsub.s32 0, %v63
    %v65 = vrot.slane %v60, %v64
    %v66 = vlaneseq
    %v67 = vshrl.u32 %v66, 7
    %v68 = vsub.s32 1, %v67
    %v69 = vrot.slane %v60, %v68
    %v70 = vlaneseq
    %v71 = vshrl.u32 %v70, 7
    %v72 = vsub.s32 2, %v71
    %v73 = vrot.slane %v60, %v72
    %vm77 = vcmask 261120
    %v79 = vsel %vm77, %v47, 0
    %81 = vmatprep.subr.mxu0 0.0
    %82 = vmatpush1.msra.mxu0 0.0
    %83 = vmatprep.subr.mxu0 0.0
    %84 = vmatpush1.msra.mxu0 0.0
    %85 = vmatprep.subr.mxu0 0.0
    %86 = vmatpush1.msra.mxu0 0.0
    %87 = vmatprep.subr.mxu0 0.0
    %88 = vmatpush1.msra.mxu0 0.0
    %89 = vmatprep.subr.mxu0 0.0
    %90 = vmatpush1.msra.mxu0 0.0
    %91 = vmatprep.subr.mxu0 0.0
    %92 = vmatpush1.msra.mxu0 0.0
    %93 = vmatprep.subr.mxu0 0.0
    %94 = vmatpush1.msra.mxu0 0.0
    %95 = vmatprep.subr.mxu0 0.0
    %96 = vmatpush1.msra.mxu0 0.0
    %97 = vmatprep.subr.mxu0 0.0
    %98 = vmatpush1.msra.mxu0 0.0
    %99 = vmatprep.subr.mxu0 0.0
    %100 = vmatpush1.msra.mxu0 0.0
    %101 = vmatprep.subr.mxu0 0.0
    %102 = vmatpush1.msra.mxu0 0.0
    %103 = vmatprep.subr.mxu0 0.0
    %104 = vmatpush1.msra.mxu0 0.0
    %105 = vmatprep.subr.mxu0 %v58
    %106 = vmatpush1.msra.mxu0 %v57
    %107 = vmatprep.subr.mxu0 %v55
    %108 = vmatpush1.msra.mxu0 %v54
    %109 = vmatprep.subr.mxu0 %v52
    %110 = vmatpush1.msra.mxu0 %v51
    %111 = vmatprep.subr.mxu0 %v49
    %112 = vmatpush1.msra.mxu0 %v48
    %113 = vmatprep.subr.mxu0 0.0
    %114 = vmatpush2.msra.mxu0 0.0
    %115 = vmatprep.subr.mxu0 0.0
    %116 = vmatpush2.msra.mxu0 0.0
    %117 = vmatprep.subr.mxu0 0.0
    %118 = vmatpush2.msra.mxu0 0.0
    %119 = vmatprep.subr.mxu0 0.0
    %120 = vmatpush2.msra.mxu0 0.0
    %121 = vmatprep.subr.mxu0 0.0
    %122 = vmatpush2.msra.mxu0 0.0
    %123 = vmatprep.subr.mxu0 0.0
    %124 = vmatpush2.msra.mxu0 0.0
    %125 = vmatprep.subr.mxu0 0.0
    %126 = vmatpush2.msra.mxu0 0.0
    %127 = vmatprep.subr.mxu0 0.0
    %128 = vmatpush2.msra.mxu0 0.0
    %129 = vmatprep.subr.mxu0 0.0
    %130 = vmatpush2.msra.mxu0 0.0
    %131 = vmatprep.subr.mxu0 0.0
    %132 = vmatpush2.msra.mxu0 0.0
    %133 = vmatprep.subr.mxu0 0.0
    %134 = vmatpush2.msra.mxu0 0.0
    %135 = vmatprep.subr.mxu0 0.0
    %136 = vmatpush2.msra.mxu0 0.0
    %137 = vmatprep.subr.mxu0 0.0
    %138 = vmatpush2.msra.mxu0 0.0
    %139 = vmatprep.subr.mxu0 0.0
    %140 = vmatpush2.msra.mxu0 0.0
    %141 = vmatprep.subr.mxu0 0.0
    %142 = vmatpush2.msra.mxu0 0.0
    %143 = vmatprep.subr.mxu0 0.0
    %144 = vmatpush2.msra.mxu0 0.0
    %145 = vmatprep.mubr.f32.mxu0 0.0
    %146 = vmatmul.mubr.f32.gmra.mxu0 %v79
    %v147 = vpop.f32.mrf.mxu0
    %v148 = vadd.f32 %v65, %v147
    %v149 = vpop.f32.mrf.mxu0
    %v150 = vadd.f32 %v69, %v149
    %151 = vdwg.mxu0
    %152 = vmatprep.subr.mxu0 0.0
    %153 = vmatpush1.msra.mxu0 0.0
    %154 = vmatprep.subr.mxu0 0.0
    %155 = vmatpush1.msra.mxu0 0.0
    %156 = vmatprep.subr.mxu0 0.0
    %157 = vmatpush1.msra.mxu0 0.0
    %158 = vmatprep.subr.mxu0 0.0
    %159 = vmatpush1.msra.mxu0 0.0
    %160 = vmatprep.subr.mxu0 0.0
    %161 = vmatpush1.msra.mxu0 0.0
    %162 = vmatprep.subr.mxu0 0.0
    %163 = vmatpush1.msra.mxu0 0.0
    %164 = vmatprep.subr.mxu0 0.0
    %165 = vmatpush1.msra.mxu0 0.0
    %166 = vmatprep.subr.mxu0 0.0
    %167 = vmatpush1.msra.mxu0 0.0
    %168 = vmatprep.subr.mxu0 0.0
    %169 = vmatpush1.msra.mxu0 0.0
    %170 = vmatprep.subr.mxu0 0.0
    %171 = vmatpush1.msra.mxu0 0.0
    %172 = vmatprep.subr.mxu0 0.0
    %173 = vmatpush1.msra.mxu0 0.0
    %174 = vmatprep.subr.mxu0 0.0
    %175 = vmatpush1.msra.mxu0 0.0
    %176 = vmatprep.subr.mxu0 0.0
    %177 = vmatpush1.msra.mxu0 %v59
    %178 = vmatprep.subr.mxu0 0.0
    %179 = vmatpush1.msra.mxu0 %v56
    %180 = vmatprep.subr.mxu0 0.0
    %181 = vmatpush1.msra.mxu0 %v53
    %182 = vmatprep.subr.mxu0 0.0
    %183 = vmatpush1.msra.mxu0 %v50
    %184 = vmatprep.subr.mxu0 0.0
    %185 = vmatpush2.msra.mxu0 0.0
    %186 = vmatprep.subr.mxu0 0.0
    %187 = vmatpush2.msra.mxu0 0.0
    %188 = vmatprep.subr.mxu0 0.0
    %189 = vmatpush2.msra.mxu0 0.0
    %190 = vmatprep.subr.mxu0 0.0
    %191 = vmatpush2.msra.mxu0 0.0
    %192 = vmatprep.subr.mxu0 0.0
    %193 = vmatpush2.msra.mxu0 0.0
    %194 = vmatprep.subr.mxu0 0.0
    %195 = vmatpush2.msra.mxu0 0.0
    %196 = vmatprep.subr.mxu0 0.0
    %197 = vmatpush2.msra.mxu0 0.0
    %198 = vmatprep.subr.mxu0 0.0
    %199 = vmatpush2.msra.mxu0 0.0
    %200 = vmatprep.subr.mxu0 0.0
    %201 = vmatpush2.msra.mxu0 0.0
    %202 = vmatprep.subr.mxu0 0.0
    %203 = vmatpush2.msra.mxu0 0.0
    %204 = vmatprep.subr.mxu0 0.0
    %205 = vmatpush2.msra.mxu0 0.0
    %206 = vmatprep.subr.mxu0 0.0
    %207 = vmatpush2.msra.mxu0 0.0
    %208 = vmatprep.subr.mxu0 0.0
    %209 = vmatpush2.msra.mxu0 0.0
    %210 = vmatprep.subr.mxu0 0.0
    %211 = vmatpush2.msra.mxu0 0.0
    %212 = vmatprep.subr.mxu0 0.0
    %213 = vmatpush2.msra.mxu0 0.0
    %214 = vmatprep.subr.mxu0 0.0
    %215 = vmatpush2.msra.mxu0 0.0
    %216 = vmatprep.mubr.f32.mxu0 0.0
    %217 = vmatmul.mubr.f32.gmra.mxu0 %v79
    %v218 = vpop.f32.mrf.mxu0
    %v219 = vadd.f32 %v73, %v218
    %v220 = vpop.f32.mrf.mxu0
    %221 = vdwg.mxu0
    %v222 = vld [vmem:[%s4] sm:$0x1]
    %v223 = vld [vmem:[#allocation2] sm:$0xff]
    %v224 = vld [vmem:[#allocation2 + $0x8] sm:$0xff]
    %v225 = vld [vmem:[#allocation2 + $0x10] sm:$0xff]
    %v226 = vld [vmem:[#allocation2 + $0x18] sm:$0xff]
    %v227 = vld [vmem:[#allocation2 + $0x20] sm:$0xff]
    %v228 = vld [vmem:[#allocation2 + $0x28] sm:$0xff]
    %v229 = vld [vmem:[#allocation2 + $0x30] sm:$0xff]
    %v230 = vld [vmem:[#allocation2 + $0x38] sm:$0xff]
    %v231 = vld [vmem:[#allocation2 + $0x40] sm:$0xff]
    %v232 = vld [vmem:[#allocation2 + $0x48] sm:$0xff]
    %v233 = vld [vmem:[#allocation2 + $0x50] sm:$0xff]
    %v234 = vld [vmem:[#allocation2 + $0x58] sm:$0xff]
    %v235 = vld [vmem:[#allocation2 + $0x60] sm:$0xff]
    %v236 = vld [vmem:[#allocation2 + $0x68] sm:$0xff]
    %v237 = vld [vmem:[#allocation2 + $0x70] sm:$0xff]
    %v238 = vld [vmem:[#allocation2 + $0x78] sm:$0xff]
    %v239 = vld [vmem:[#allocation2 + $0x80] sm:$0xff]
    %v240 = vld [vmem:[#allocation2 + $0x88] sm:$0xff]
    %v241 = vld [vmem:[#allocation2 + $0x90] sm:$0xff]
    %v242 = vld [vmem:[#allocation2 + $0x98] sm:$0xff]
    %v243 = vld [vmem:[#allocation2 + $0xa0] sm:$0xff]
    %v244 = vld [vmem:[#allocation2 + $0xa8] sm:$0xff]
    %v245 = vld [vmem:[#allocation2 + $0xb0] sm:$0xff]
    %v246 = vld [vmem:[#allocation2 + $0xb8] sm:$0xff]
    %v247 = vld [vmem:[#allocation2 + $0xc0] sm:$0xff]
    %v248 = vld [vmem:[#allocation2 + $0xc8] sm:$0xff]
    %v249 = vld [vmem:[#allocation2 + $0xd0] sm:$0xff]
    %v250 = vld [vmem:[#allocation2 + $0xd8] sm:$0xff]
    %v251 = vld [vmem:[#allocation2 + $0xe0] sm:$0xff]
    %v252 = vld [vmem:[#allocation2 + $0xe8] sm:$0xff]
    %v253 = vld [vmem:[#allocation2 + $0xf0] sm:$0xff]
    %v254 = vld [vmem:[#allocation2 + $0xf8] sm:$0xff]
    %v255 = vld [vmem:[#allocation2 + $0x100] sm:$0xff]
    %v256 = vld [vmem:[#allocation2 + $0x108] sm:$0xff]
    %v257 = vld [vmem:[#allocation2 + $0x110] sm:$0xff]
    %v258 = vld [vmem:[#allocation2 + $0x118] sm:$0xff]
    %v259 = vld [vmem:[#allocation2 + $0x120] sm:$0xff]
    %v260 = vld [vmem:[#allocation2 + $0x128] sm:$0xff]
    %v261 = vld [vmem:[#allocation2 + $0x130] sm:$0xff]
    %v262 = vld [vmem:[#allocation2 + $0x138] sm:$0xff]
    %v263 = vld [vmem:[#allocation2 + $0x140] sm:$0xff]
    %v264 = vld [vmem:[#allocation2 + $0x148] sm:$0xff]
    %v265 = vld [vmem:[#allocation2 + $0x150] sm:$0xff]
    %v266 = vld [vmem:[#allocation2 + $0x158] sm:$0xff]
    %v267 = vld [vmem:[#allocation2 + $0x160] sm:$0xff]
    %v268 = vld [vmem:[#allocation2 + $0x168] sm:$0xff]
    %v269 = vld [vmem:[#allocation2 + $0x170] sm:$0xff]
    %v270 = vld [vmem:[#allocation2 + $0x178] sm:$0xff]
    %271 = vmatprep.subr.mxu0 %v269
    %272 = vmatpush1.msra.mxu0 %v268
    %273 = vmatprep.subr.mxu0 %v266
    %274 = vmatpush1.msra.mxu0 %v265
    %275 = vmatprep.subr.mxu0 %v263
    %276 = vmatpush1.msra.mxu0 %v262
    %277 = vmatprep.subr.mxu0 %v260
    %278 = vmatpush1.msra.mxu0 %v259
    %279 = vmatprep.subr.mxu0 %v257
    %280 = vmatpush1.msra.mxu0 %v256
    %281 = vmatprep.subr.mxu0 %v254
    %282 = vmatpush1.msra.mxu0 %v253
    %283 = vmatprep.subr.mxu0 %v251
    %284 = vmatpush1.msra.mxu0 %v250
    %285 = vmatprep.subr.mxu0 %v248
    %286 = vmatpush1.msra.mxu0 %v247
    %287 = vmatprep.subr.mxu0 %v245
    %288 = vmatpush1.msra.mxu0 %v244
    %289 = vmatprep.subr.mxu0 %v242
    %290 = vmatpush1.msra.mxu0 %v241
    %291 = vmatprep.subr.mxu0 %v239
    %292 = vmatpush1.msra.mxu0 %v238
    %293 = vmatprep.subr.mxu0 %v236
    %294 = vmatpush1.msra.mxu0 %v235
    %295 = vmatprep.subr.mxu0 %v233
    %296 = vmatpush1.msra.mxu0 %v232
    %297 = vmatprep.subr.mxu0 %v230
    %298 = vmatpush1.msra.mxu0 %v229
    %299 = vmatprep.subr.mxu0 %v227
    %300 = vmatpush1.msra.mxu0 %v226
    %301 = vmatprep.subr.mxu0 %v224
    %302 = vmatpush1.msra.mxu0 %v223
    %303 = vmatprep.subr.mxu0 0.0
    %304 = vmatpush2.msra.mxu0 0.0
    %305 = vmatprep.subr.mxu0 0.0
    %306 = vmatpush2.msra.mxu0 0.0
    %307 = vmatprep.subr.mxu0 0.0
    %308 = vmatpush2.msra.mxu0 0.0
    %309 = vmatprep.subr.mxu0 0.0
    %310 = vmatpush2.msra.mxu0 0.0
    %311 = vmatprep.subr.mxu0 0.0
    %312 = vmatpush2.msra.mxu0 0.0
    %313 = vmatprep.subr.mxu0 0.0
    %314 = vmatpush2.msra.mxu0 0.0
    %315 = vmatprep.subr.mxu0 0.0
    %316 = vmatpush2.msra.mxu0 0.0
    %317 = vmatprep.subr.mxu0 0.0
    %318 = vmatpush2.msra.mxu0 0.0
    %319 = vmatprep.subr.mxu0 0.0
    %320 = vmatpush2.msra.mxu0 0.0
    %321 = vmatprep.subr.mxu0 0.0
    %322 = vmatpush2.msra.mxu0 0.0
    %323 = vmatprep.subr.mxu0 0.0
    %324 = vmatpush2.msra.mxu0 0.0
    %325 = vmatprep.subr.mxu0 0.0
    %326 = vmatpush2.msra.mxu0 0.0
    %327 = vmatprep.subr.mxu0 0.0
    %328 = vmatpush2.msra.mxu0 0.0
    %329 = vmatprep.subr.mxu0 0.0
    %330 = vmatpush2.msra.mxu0 0.0
    %331 = vmatprep.subr.mxu0 0.0
    %332 = vmatpush2.msra.mxu0 0.0
    %333 = vmatprep.subr.mxu0 0.0
    %334 = vmatpush2.msra.mxu0 0.0
    %335 = vmatprep.mubr.f32.mxu0 0.0
    %336 = vmatmul.mubr.f32.gmra.mxu0 0.0
    %v337 = vpop.f32.mrf.mxu0
    %v338 = vadd.f32 0.0, %v337
    %v339 = vpop.f32.mrf.mxu0
    %v340 = vadd.f32 0.0, %v339
    %341 = vdwg.mxu0
    %342 = vmatprep.subr.mxu0 0.0
    %343 = vmatpush1.msra.mxu0 %v270
    %344 = vmatprep.subr.mxu0 0.0
    %345 = vmatpush1.msra.mxu0 %v267
    %346 = vmatprep.subr.mxu0 0.0
    %347 = vmatpush1.msra.mxu0 %v264
    %348 = vmatprep.subr.mxu0 0.0
    %349 = vmatpush1.msra.mxu0 %v261
    %350 = vmatprep.subr.mxu0 0.0
    %351 = vmatpush1.msra.mxu0 %v258
    %352 = vmatprep.subr.mxu0 0.0
    %353 = vmatpush1.msra.mxu0 %v255
    %354 = vmatprep.subr.mxu0 0.0
    %355 = vmatpush1.msra.mxu0 %v252
    %356 = vmatprep.subr.mxu0 0.0
    %357 = vmatpush1.msra.mxu0 %v249
    %358 = vmatprep.subr.mxu0 0.0
    %359 = vmatpush1.msra.mxu0 %v246
    %360 = vmatprep.subr.mxu0 0.0
    %361 = vmatpush1.msra.mxu0 %v243
    %362 = vmatprep.subr.mxu0 0.0
    %363 = vmatpush1.msra.mxu0 %v240
    %364 = vmatprep.subr.mxu0 0.0
    %365 = vmatpush1.msra.mxu0 %v237
    %366 = vmatprep.subr.mxu0 0.0
    %367 = vmatpush1.msra.mxu0 %v234
    %368 = vmatprep.subr.mxu0 0.0
    %369 = vmatpush1.msra.mxu0 %v231
    %370 = vmatprep.subr.mxu0 0.0
    %371 = vmatpush1.msra.mxu0 %v228
    %372 = vmatprep.subr.mxu0 0.0
    %373 = vmatpush1.msra.mxu0 %v225
    %374 = vmatprep.subr.mxu0 0.0
    %375 = vmatpush2.msra.mxu0 0.0
    %376 = vmatprep.subr.mxu0 0.0
    %377 = vmatpush2.msra.mxu0 0.0
    %378 = vmatprep.subr.mxu0 0.0
    %379 = vmatpush2.msra.mxu0 0.0
    %380 = vmatprep.subr.mxu0 0.0
    %381 = vmatpush2.msra.mxu0 0.0
    %382 = vmatprep.subr.mxu0 0.0
    %383 = vmatpush2.msra.mxu0 0.0
    %384 = vmatprep.subr.mxu0 0.0
    %385 = vmatpush2.msra.mxu0 0.0
    %386 = vmatprep.subr.mxu0 0.0
    %387 = vmatpush2.msra.mxu0 0.0
    %388 = vmatprep.subr.mxu0 0.0
    %389 = vmatpush2.msra.mxu0 0.0
    %390 = vmatprep.subr.mxu0 0.0
    %391 = vmatpush2.msra.mxu0 0.0
    %392 = vmatprep.subr.mxu0 0.0
    %393 = vmatpush2.msra.mxu0 0.0
    %394 = vmatprep.subr.mxu0 0.0
    %395 = vmatpush2.msra.mxu0 0.0
    %396 = vmatprep.subr.mxu0 0.0
    %397 = vmatpush2.msra.mxu0 0.0
    %398 = vmatprep.subr.mxu0 0.0
    %399 = vmatpush2.msra.mxu0 0.0
    %400 = vmatprep.subr.mxu0 0.0
    %401 = vmatpush2.msra.mxu0 0.0
    %402 = vmatprep.subr.mxu0 0.0
    %403 = vmatpush2.msra.mxu0 0.0
    %404 = vmatprep.subr.mxu0 0.0
    %405 = vmatpush2.msra.mxu0 0.0
    %406 = vmatprep.mubr.f32.mxu0 0.0
    %407 = vmatmul.mubr.f32.gmra.mxu0 0.0
    %v408 = vpop.f32.mrf.mxu0
    %v409 = vadd.f32 0.0, %v408
    %v410 = vpop.f32.mrf.mxu0
    %411 = vdwg.mxu0
    %v412 = vadd.f32 %v148, %v338
    %v413 = vxor.u32 %v412, 2147483648
    %v414 = vmul.f32 %v413, 1.442695
    %v415 = vpow.pop %v414
    %v416 = vadd.f32 %v415, 1.0
    %v417 = vrcp.pop %v416
    %v418 = vmul.f32 1.0, %v417
    %v419 = vadd.f32 %v150, %v340
    %v420 = vxor.u32 %v419, 2147483648
    %v421 = vmul.f32 %v420, 1.442695
    %v422 = vpow.pop %v421
    %v423 = vadd.f32 %v422, 1.0
    %v424 = vrcp.pop %v423
    %v425 = vmul.f32 1.0, %v424
    %v426 = vadd.f32 %v409, %v222
    %v427 = vmul.f32 %v418, %v426
    %v428 = vadd.f32 %v219, %v427
    %v429 = vtanh.pop %v428
    %v430 = vsub.f32 1.0, %v425
    %v431 = vmul.f32 %v430, %v429
    %v432 = vmul.f32 %v425, 0.0
    %v433 = vadd.f32 %v431, %v432
    %434 = vmatprep.subr.mxu0 %v269
    %435 = vmatpush1.msra.mxu0 %v268
    %436 = vmatprep.subr.mxu0 %v266
    %437 = vmatpush1.msra.mxu0 %v265
    %438 = vmatprep.subr.mxu0 %v263
    %439 = vmatpush1.msra.mxu0 %v262
    %440 = vmatprep.subr.mxu0 %v260
    %441 = vmatpush1.msra.mxu0 %v259
    %442 = vmatprep.subr.mxu0 %v257
    %443 = vmatpush1.msra.mxu0 %v256
    %444 = vmatprep.subr.mxu0 %v254
    %445 = vmatpush1.msra.mxu0 %v253
    %446 = vmatprep.subr.mxu0 %v251
    %447 = vmatpush1.msra.mxu0 %v250
    %448 = vmatprep.subr.mxu0 %v248
    %449 = vmatpush1.msra.mxu0 %v247
    %450 = vmatprep.subr.mxu0 %v245
    %451 = vmatpush1.msra.mxu0 %v244
    %452 = vmatprep.subr.mxu0 %v242
    %453 = vmatpush1.msra.mxu0 %v241
    %454 = vmatprep.subr.mxu0 %v239
    %455 = vmatpush1.msra.mxu0 %v238
    %456 = vmatprep.subr.mxu0 %v236
    %457 = vmatpush1.msra.mxu0 %v235
    %458 = vmatprep.subr.mxu0 %v233
    %459 = vmatpush1.msra.mxu0 %v232
    %460 = vmatprep.subr.mxu0 %v230
    %461 = vmatpush1.msra.mxu0 %v229
    %462 = vmatprep.subr.mxu0 %v227
    %463 = vmatpush1.msra.mxu0 %v226
    %464 = vmatprep.subr.mxu0 %v224
    %465 = vmatpush1.msra.mxu0 %v223
    %466 = vmatprep.subr.mxu0 0.0
    %467 = vmatpush2.msra.mxu0 0.0
    %468 = vmatprep.subr.mxu0 0.0
    %469 = vmatpush2.msra.mxu0 0.0
    %470 = vmatprep.subr.mxu0 0.0
    %471 = vmatpush2.msra.mxu0 0.0
    %472 = vmatprep.subr.mxu0 0.0
    %473 = vmatpush2.msra.mxu0 0.0
    %474 = vmatprep.subr.mxu0 0.0
    %475 = vmatpush2.msra.mxu0 0.0
    %476 = vmatprep.subr.mxu0 0.0
    %477 = vmatpush2.msra.mxu0 0.0
    %478 = vmatprep.subr.mxu0 0.0
    %479 = vmatpush2.msra.mxu0 0.0
    %480 = vmatprep.subr.mxu0 0.0
    %481 = vmatpush2.msra.mxu0 0.0
    %482 = vmatprep.subr.mxu0 0.0
    %483 = vmatpush2.msra.mxu0 0.0
    %484 = vmatprep.subr.mxu0 0.0
    %485 = vmatpush2.msra.mxu0 0.0
    %486 = vmatprep.subr.mxu0 0.0
    %487 = vmatpush2.msra.mxu0 0.0
    %488 = vmatprep.subr.mxu0 0.0
    %489 = vmatpush2.msra.mxu0 0.0
    %490 = vmatprep.subr.mxu0 0.0
    %491 = vmatpush2.msra.mxu0 0.0
    %492 = vmatprep.subr.mxu0 0.0
    %493 = vmatpush2.msra.mxu0 0.0
    %494 = vmatprep.subr.mxu0 0.0
    %495 = vmatpush2.msra.mxu0 0.0
    %496 = vmatprep.subr.mxu0 0.0
    %497 = vmatpush2.msra.mxu0 0.0
    %498 = vmatprep.mubr.f32.mxu0 0.0
    %499 = vmatmul.mubr.f32.gmra.mxu0 %v433
    %v500 = vpop.f32.mrf.mxu0
    %v501 = vadd.f32 0.0, %v500
    %v502 = vpop.f32.mrf.mxu0
    %v503 = vadd.f32 0.0, %v502
    %504 = vdwg.mxu0
    %505 = vmatprep.subr.mxu0 0.0
    %506 = vmatpush1.msra.mxu0 %v270
    %507 = vmatprep.subr.mxu0 0.0
    %508 = vmatpush1.msra.mxu0 %v267
    %509 = vmatprep.subr.mxu0 0.0
    %510 = vmatpush1.msra.mxu0 %v264
    %511 = vmatprep.subr.mxu0 0.0
    %512 = vmatpush1.msra.mxu0 %v261
    %513 = vmatprep.subr.mxu0 0.0
    %514 = vmatpush1.msra.mxu0 %v258
    %515 = vmatprep.subr.mxu0 0.0
    %516 = vmatpush1.msra.mxu0 %v255
    %517 = vmatprep.subr.mxu0 0.0
    %518 = vmatpush1.msra.mxu0 %v252
    %519 = vmatprep.subr.mxu0 0.0
    %520 = vmatpush1.msra.mxu0 %v249
    %521 = vmatprep.subr.mxu0 0.0
    %522 = vmatpush1.msra.mxu0 %v246
    %523 = vmatprep.subr.mxu0 0.0
    %524 = vmatpush1.msra.mxu0 %v243
    %525 = vmatprep.subr.mxu0 0.0
    %526 = vmatpush1.msra.mxu0 %v240
    %527 = vmatprep.subr.mxu0 0.0
    %528 = vmatpush1.msra.mxu0 %v237
    %529 = vmatprep.subr.mxu0 0.0
    %530 = vmatpush1.msra.mxu0 %v234
    %531 = vmatprep.subr.mxu0 0.0
    %532 = vmatpush1.msra.mxu0 %v231
    %533 = vmatprep.subr.mxu0 0.0
    %534 = vmatpush1.msra.mxu0 %v228
    %535 = vmatprep.subr.mxu0 0.0
    %536 = vmatpush1.msra.mxu0 %v225
    %537 = vmatprep.subr.mxu0 0.0
    %538 = vmatpush2.msra.mxu0 0.0
    %539 = vmatprep.subr.mxu0 0.0
    %540 = vmatpush2.msra.mxu0 0.0
    %541 = vmatprep.subr.mxu0 0.0
    %542 = vmatpush2.msra.mxu0 0.0
    %543 = vmatprep.subr.mxu0 0.0
    %544 = vmatpush2.msra.mxu0 0.0
    %545 = vmatprep.subr.mxu0 0.0
    %546 = vmatpush2.msra.mxu0 0.0
    %547 = vmatprep.subr.mxu0 0.0
    %548 = vmatpush2.msra.mxu0 0.0
    %549 = vmatprep.subr.mxu0 0.0
    %550 = vmatpush2.msra.mxu0 0.0
    %551 = vmatprep.subr.mxu0 0.0
    %552 = vmatpush2.msra.mxu0 0.0
    %553 = vmatprep.subr.mxu0 0.0
    %554 = vmatpush2.msra.mxu0 0.0
    %555 = vmatprep.subr.mxu0 0.0
    %556 = vmatpush2.msra.mxu0 0.0
    %557 = vmatprep.subr.mxu0 0.0
    %558 = vmatpush2.msra.mxu0 0.0
    %559 = vmatprep.subr.mxu0 0.0
    %560 = vmatpush2.msra.mxu0 0.0
    %561 = vmatprep.subr.mxu0 0.0
    %562 = vmatpush2.msra.mxu0 0.0
    %563 = vmatprep.subr.mxu0 0.0
    %564 = vmatpush2.msra.mxu0 0.0
    %565 = vmatprep.subr.mxu0 0.0
    %566 = vmatpush2.msra.mxu0 0.0
    %567 = vmatprep.subr.mxu0 0.0
    %568 = vmatpush2.msra.mxu0 0.0
    %569 = vmatprep.mubr.f32.mxu0 0.0
    %570 = vmatmul.mubr.f32.gmra.mxu0 %v433
    %v571 = vpop.f32.mrf.mxu0
    %v572 = vadd.f32 0.0, %v571
    %v573 = vpop.f32.mrf.mxu0
    %574 = vdwg.mxu0
    %v576 = vrot.slane %v501, 7
    %v578 = vadd.f32 %v148, %v576
    %v579 = vxor.u32 %v578, 2147483648
    %v580 = vmul.f32 %v579, 1.442695
    %v581 = vpow.pop %v580
    %v582 = vadd.f32 %v581, 1.0
    %v583 = vrcp.pop %v582
    %v584 = vmul.f32 1.0, %v583
    %v586 = vrot.slane %v503, 7
    %v588 = vadd.f32 %v150, %v586
    %v589 = vxor.u32 %v588, 2147483648
    %v590 = vmul.f32 %v589, 1.442695
    %v591 = vpow.pop %v590
    %v592 = vadd.f32 %v591, 1.0
    %v593 = vrcp.pop %v592
    %v594 = vmul.f32 1.0, %v593
    %v595 = vadd.f32 %v572, %v222
    %v597 = vrot.slane %v595, 7
    %v599 = vmul.f32 %v584, %v597
    %v600 = vadd.f32 %v219, %v599
    %v601 = vtanh.pop %v600
    %v602 = vsub.f32 1.0, %v594
    %v603 = vmul.f32 %v602, %v601
    %v605 = vrot.slane %v433, 7
    %v607 = vmul.f32 %v594, %v605
    %v608 = vadd.f32 %v603, %v607
    %v610 = vrot.slane %v608, 1
    %612 = vmatprep.subr.mxu0 %v269
    %613 = vmatpush1.msra.mxu0 %v268
    %614 = vmatprep.subr.mxu0 %v266
    %615 = vmatpush1.msra.mxu0 %v265
    %616 = vmatprep.subr.mxu0 %v263
    %617 = vmatpush1.msra.mxu0 %v262
    %618 = vmatprep.subr.mxu0 %v260
    %619 = vmatpush1.msra.mxu0 %v259
    %620 = vmatprep.subr.mxu0 %v257
    %621 = vmatpush1.msra.mxu0 %v256
    %622 = vmatprep.subr.mxu0 %v254
    %623 = vmatpush1.msra.mxu0 %v253
    %624 = vmatprep.subr.mxu0 %v251
    %625 = vmatpush1.msra.mxu0 %v250
    %626 = vmatprep.subr.mxu0 %v248
    %627 = vmatpush1.msra.mxu0 %v247
    %628 = vmatprep.subr.mxu0 %v245
    %629 = vmatpush1.msra.mxu0 %v244
    %630 = vmatprep.subr.mxu0 %v242
    %631 = vmatpush1.msra.mxu0 %v241
    %632 = vmatprep.subr.mxu0 %v239
    %633 = vmatpush1.msra.mxu0 %v238
    %634 = vmatprep.subr.mxu0 %v236
    %635 = vmatpush1.msra.mxu0 %v235
    %636 = vmatprep.subr.mxu0 %v233
    %637 = vmatpush1.msra.mxu0 %v232
    %638 = vmatprep.subr.mxu0 %v230
    %639 = vmatpush1.msra.mxu0 %v229
    %640 = vmatprep.subr.mxu0 %v227
    %641 = vmatpush1.msra.mxu0 %v226
    %642 = vmatprep.subr.mxu0 %v224
    %643 = vmatpush1.msra.mxu0 %v223
    %644 = vmatprep.subr.mxu0 0.0
    %645 = vmatpush2.msra.mxu0 0.0
    %646 = vmatprep.subr.mxu0 0.0
    %647 = vmatpush2.msra.mxu0 0.0
    %648 = vmatprep.subr.mxu0 0.0
    %649 = vmatpush2.msra.mxu0 0.0
    %650 = vmatprep.subr.mxu0 0.0
    %651 = vmatpush2.msra.mxu0 0.0
    %652 = vmatprep.subr.mxu0 0.0
    %653 = vmatpush2.msra.mxu0 0.0
    %654 = vmatprep.subr.mxu0 0.0
    %655 = vmatpush2.msra.mxu0 0.0
    %656 = vmatprep.subr.mxu0 0.0
    %657 = vmatpush2.msra.mxu0 0.0
    %658 = vmatprep.subr.mxu0 0.0
    %659 = vmatpush2.msra.mxu0 0.0
    %660 = vmatprep.subr.mxu0 0.0
    %661 = vmatpush2.msra.mxu0 0.0
    %662 = vmatprep.subr.mxu0 0.0
    %663 = vmatpush2.msra.mxu0 0.0
    %664 = vmatprep.subr.mxu0 0.0
    %665 = vmatpush2.msra.mxu0 0.0
    %666 = vmatprep.subr.mxu0 0.0
    %667 = vmatpush2.msra.mxu0 0.0
    %668 = vmatprep.subr.mxu0 0.0
    %669 = vmatpush2.msra.mxu0 0.0
    %670 = vmatprep.subr.mxu0 0.0
    %671 = vmatpush2.msra.mxu0 0.0
    %672 = vmatprep.subr.mxu0 0.0
    %673 = vmatpush2.msra.mxu0 0.0
    %674 = vmatprep.subr.mxu0 0.0
    %675 = vmatpush2.msra.mxu0 0.0
    %676 = vmatprep.mubr.f32.mxu0 0.0
    %677 = vmatmul.mubr.f32.gmra.mxu0 %v610
    %v678 = vpop.f32.mrf.mxu0
    %v679 = vadd.f32 0.0, %v678
    %v680 = vpop.f32.mrf.mxu0
    %v681 = vadd.f32 0.0, %v680
    %682 = vdwg.mxu0
    %683 = vmatprep.subr.mxu0 0.0
    %684 = vmatpush1.msra.mxu0 %v270
    %685 = vmatprep.subr.mxu0 0.0
    %686 = vmatpush1.msra.mxu0 %v267
    %687 = vmatprep.subr.mxu0 0.0
    %688 = vmatpush1.msra.mxu0 %v264
    %689 = vmatprep.subr.mxu0 0.0
    %690 = vmatpush1.msra.mxu0 %v261
    %691 = vmatprep.subr.mxu0 0.0
    %692 = vmatpush1.msra.mxu0 %v258
    %693 = vmatprep.subr.mxu0 0.0
    %694 = vmatpush1.msra.mxu0 %v255
    %695 = vmatprep.subr.mxu0 0.0
    %696 = vmatpush1.msra.mxu0 %v252
    %697 = vmatprep.subr.mxu0 0.0
    %698 = vmatpush1.msra.mxu0 %v249
    %699 = vmatprep.subr.mxu0 0.0
    %700 = vmatpush1.msra.mxu0 %v246
    %701 = vmatprep.subr.mxu0 0.0
    %702 = vmatpush1.msra.mxu0 %v243
    %703 = vmatprep.subr.mxu0 0.0
    %704 = vmatpush1.msra.mxu0 %v240
    %705 = vmatprep.subr.mxu0 0.0
    %706 = vmatpush1.msra.mxu0 %v237
    %707 = vmatprep.subr.mxu0 0.0
    %708 = vmatpush1.msra.mxu0 %v234
    %709 = vmatprep.subr.mxu0 0.0
    %710 = vmatpush1.msra.mxu0 %v231
    %711 = vmatprep.subr.mxu0 0.0
    %712 = vmatpush1.msra.mxu0 %v228
    %713 = vmatprep.subr.mxu0 0.0
    %714 = vmatpush1.msra.mxu0 %v225
    %715 = vmatprep.subr.mxu0 0.0
    %716 = vmatpush2.msra.mxu0 0.0
    %717 = vmatprep.subr.mxu0 0.0
    %718 = vmatpush2.msra.mxu0 0.0
    %719 = vmatprep.subr.mxu0 0.0
    %720 = vmatpush2.msra.mxu0 0.0
    %721 = vmatprep.subr.mxu0 0.0
    %722 = vmatpush2.msra.mxu0 0.0
    %723 = vmatprep.subr.mxu0 0.0
    %724 = vmatpush2.msra.mxu0 0.0
    %725 = vmatprep.subr.mxu0 0.0
    %726 = vmatpush2.msra.mxu0 0.0
    %727 = vmatprep.subr.mxu0 0.0
    %728 = vmatpush2.msra.mxu0 0.0
    %729 = vmatprep.subr.mxu0 0.0
    %730 = vmatpush2.msra.mxu0 0.0
    %731 = vmatprep.subr.mxu0 0.0
    %732 = vmatpush2.msra.mxu0 0.0
    %733 = vmatprep.subr.mxu0 0.0
    %734 = vmatpush2.msra.mxu0 0.0
    %735 = vmatprep.subr.mxu0 0.0
    %736 = vmatpush2.msra.mxu0 0.0
    %737 = vmatprep.subr.mxu0 0.0
    %738 = vmatpush2.msra.mxu0 0.0
    %739 = vmatprep.subr.mxu0 0.0
    %740 = vmatpush2.msra.mxu0 0.0
    %741 = vmatprep.subr.mxu0 0.0
    %742 = vmatpush2.msra.mxu0 0.0
    %743 = vmatprep.subr.mxu0 0.0
    %744 = vmatpush2.msra.mxu0 0.0
    %745 = vmatprep.subr.mxu0 0.0
    %746 = vmatpush2.msra.mxu0 0.0
    %747 = vmatprep.mubr.f32.mxu0 0.0
    %748 = vmatmul.mubr.f32.gmra.mxu0 %v610
    %v749 = vpop.f32.mrf.mxu0
    %v750 = vadd.f32 0.0, %v749
    %v751 = vpop.f32.mrf.mxu0
    %752 = vdwg.mxu0
    %v754 = vrot.slane %v679, 6
    %v756 = vadd.f32 %v148, %v754
    %v757 = vxor.u32 %v756, 2147483648
    %v758 = vmul.f32 %v757, 1.442695
    %v759 = vpow.pop %v758
    %v760 = vadd.f32 %v759, 1.0
    %v761 = vrcp.pop %v760
    %v762 = vmul.f32 1.0, %v761
    %v764 = vrot.slane %v681, 6
    %v766 = vadd.f32 %v150, %v764
    %v767 = vxor.u32 %v766, 2147483648
    %v768 = vmul.f32 %v767, 1.442695
    %v769 = vpow.pop %v768
    %v770 = vadd.f32 %v769, 1.0
    %v771 = vrcp.pop %v770
    %v772 = vmul.f32 1.0, %v771
    %v773 = vadd.f32 %v750, %v222
    %v775 = vrot.slane %v773, 6
    %v777 = vmul.f32 %v762, %v775
    %v778 = vadd.f32 %v219, %v777
    %v779 = vtanh.pop %v778
    %v780 = vsub.f32 1.0, %v772
    %v781 = vmul.f32 %v780, %v779
    %v782 = vrot.slane %v608, 7
    %v784 = vmul.f32 %v772, %v782
    %v785 = vadd.f32 %v781, %v784
    %v787 = vrot.slane %v785, 2
    %789 = vmatprep.subr.mxu0 %v269
    %790 = vmatpush1.msra.mxu0 %v268
    %791 = vmatprep.subr.mxu0 %v266
    %792 = vmatpush1.msra.mxu0 %v265
    %793 = vmatprep.subr.mxu0 %v263
    %794 = vmatpush1.msra.mxu0 %v262
    %795 = vmatprep.subr.mxu0 %v260
    %796 = vmatpush1.msra.mxu0 %v259
    %797 = vmatprep.subr.mxu0 %v257
    %798 = vmatpush1.msra.mxu0 %v256
    %799 = vmatprep.subr.mxu0 %v254
    %800 = vmatpush1.msra.mxu0 %v253
    %801 = vmatprep.subr.mxu0 %v251
    %802 = vmatpush1.msra.mxu0 %v250
    %803 = vmatprep.subr.mxu0 %v248
    %804 = vmatpush1.msra.mxu0 %v247
    %805 = vmatprep.subr.mxu0 %v245
    %806 = vmatpush1.msra.mxu0 %v244
    %807 = vmatprep.subr.mxu0 %v242
    %808 = vmatpush1.msra.mxu0 %v241
    %809 = vmatprep.subr.mxu0 %v239
    %810 = vmatpush1.msra.mxu0 %v238
    %811 = vmatprep.subr.mxu0 %v236
    %812 = vmatpush1.msra.mxu0 %v235
    %813 = vmatprep.subr.mxu0 %v233
    %814 = vmatpush1.msra.mxu0 %v232
    %815 = vmatprep.subr.mxu0 %v230
    %816 = vmatpush1.msra.mxu0 %v229
    %817 = vmatprep.subr.mxu0 %v227
    %818 = vmatpush1.msra.mxu0 %v226
    %819 = vmatprep.subr.mxu0 %v224
    %820 = vmatpush1.msra.mxu0 %v223
    %821 = vmatprep.subr.mxu0 0.0
    %822 = vmatpush2.msra.mxu0 0.0
    %823 = vmatprep.subr.mxu0 0.0
    %824 = vmatpush2.msra.mxu0 0.0
    %825 = vmatprep.subr.mxu0 0.0
    %826 = vmatpush2.msra.mxu0 0.0
    %827 = vmatprep.subr.mxu0 0.0
    %828 = vmatpush2.msra.mxu0 0.0
    %829 = vmatprep.subr.mxu0 0.0
    %830 = vmatpush2.msra.mxu0 0.0
    %831 = vmatprep.subr.mxu0 0.0
    %832 = vmatpush2.msra.mxu0 0.0
    %833 = vmatprep.subr.mxu0 0.0
    %834 = vmatpush2.msra.mxu0 0.0
    %835 = vmatprep.subr.mxu0 0.0
    %836 = vmatpush2.msra.mxu0 0.0
    %837 = vmatprep.subr.mxu0 0.0
    %838 = vmatpush2.msra.mxu0 0.0
    %839 = vmatprep.subr.mxu0 0.0
    %840 = vmatpush2.msra.mxu0 0.0
    %841 = vmatprep.subr.mxu0 0.0
    %842 = vmatpush2.msra.mxu0 0.0
    %843 = vmatprep.subr.mxu0 0.0
    %844 = vmatpush2.msra.mxu0 0.0
    %845 = vmatprep.subr.mxu0 0.0
    %846 = vmatpush2.msra.mxu0 0.0
    %847 = vmatprep.subr.mxu0 0.0
    %848 = vmatpush2.msra.mxu0 0.0
    %849 = vmatprep.subr.mxu0 0.0
    %850 = vmatpush2.msra.mxu0 0.0
    %851 = vmatprep.subr.mxu0 0.0
    %852 = vmatpush2.msra.mxu0 0.0
    %853 = vmatprep.mubr.f32.mxu0 0.0
    %854 = vmatmul.mubr.f32.gmra.mxu0 %v787
    %v855 = vpop.f32.mrf.mxu0
    %v856 = vadd.f32 0.0, %v855
    %v857 = vpop.f32.mrf.mxu0
    %v858 = vadd.f32 0.0, %v857
    %859 = vdwg.mxu0
    %860 = vmatprep.subr.mxu0 0.0
    %861 = vmatpush1.msra.mxu0 %v270
    %862 = vmatprep.subr.mxu0 0.0
    %863 = vmatpush1.msra.mxu0 %v267
    %864 = vmatprep.subr.mxu0 0.0
    %865 = vmatpush1.msra.mxu0 %v264
    %866 = vmatprep.subr.mxu0 0.0
    %867 = vmatpush1.msra.mxu0 %v261
    %868 = vmatprep.subr.mxu0 0.0
    %869 = vmatpush1.msra.mxu0 %v258
    %870 = vmatprep.subr.mxu0 0.0
    %871 = vmatpush1.msra.mxu0 %v255
    %872 = vmatprep.subr.mxu0 0.0
    %873 = vmatpush1.msra.mxu0 %v252
    %874 = vmatprep.subr.mxu0 0.0
    %875 = vmatpush1.msra.mxu0 %v249
    %876 = vmatprep.subr.mxu0 0.0
    %877 = vmatpush1.msra.mxu0 %v246
    %878 = vmatprep.subr.mxu0 0.0
    %879 = vmatpush1.msra.mxu0 %v243
    %880 = vmatprep.subr.mxu0 0.0
    %881 = vmatpush1.msra.mxu0 %v240
    %882 = vmatprep.subr.mxu0 0.0
    %883 = vmatpush1.msra.mxu0 %v237
    %884 = vmatprep.subr.mxu0 0.0
    %885 = vmatpush1.msra.mxu0 %v234
    %886 = vmatprep.subr.mxu0 0.0
    %887 = vmatpush1.msra.mxu0 %v231
    %888 = vmatprep.subr.mxu0 0.0
    %889 = vmatpush1.msra.mxu0 %v228
    %890 = vmatprep.subr.mxu0 0.0
    %891 = vmatpush1.msra.mxu0 %v225
    %892 = vmatprep.subr.mxu0 0.0
    %893 = vmatpush2.msra.mxu0 0.0
    %894 = vmatprep.subr.mxu0 0.0
    %895 = vmatpush2.msra.mxu0 0.0
    %896 = vmatprep.subr.mxu0 0.0
    %897 = vmatpush2.msra.mxu0 0.0
    %898 = vmatprep.subr.mxu0 0.0
    %899 = vmatpush2.msra.mxu0 0.0
    %900 = vmatprep.subr.mxu0 0.0
    %901 = vmatpush2.msra.mxu0 0.0
    %902 = vmatprep.subr.mxu0 0.0
    %903 = vmatpush2.msra.mxu0 0.0
    %904 = vmatprep.subr.mxu0 0.0
    %905 = vmatpush2.msra.mxu0 0.0
    %906 = vmatprep.subr.mxu0 0.0
    %907 = vmatpush2.msra.mxu0 0.0
    %908 = vmatprep.subr.mxu0 0.0
    %909 = vmatpush2.msra.mxu0 0.0
    %910 = vmatprep.subr.mxu0 0.0
    %911 = vmatpush2.msra.mxu0 0.0
    %912 = vmatprep.subr.mxu0 0.0
    %913 = vmatpush2.msra.mxu0 0.0
    %914 = vmatprep.subr.mxu0 0.0
    %915 = vmatpush2.msra.mxu0 0.0
    %916 = vmatprep.subr.mxu0 0.0
    %917 = vmatpush2.msra.mxu0 0.0
    %918 = vmatprep.subr.mxu0 0.0
    %919 = vmatpush2.msra.mxu0 0.0
    %920 = vmatprep.subr.mxu0 0.0
    %921 = vmatpush2.msra.mxu0 0.0
    %922 = vmatprep.subr.mxu0 0.0
    %923 = vmatpush2.msra.mxu0 0.0
    %924 = vmatprep.mubr.f32.mxu0 0.0
    %925 = vmatmul.mubr.f32.gmra.mxu0 %v787
    %v926 = vpop.f32.mrf.mxu0
    %v927 = vadd.f32 0.0, %v926
    %v928 = vpop.f32.mrf.mxu0
    %929 = vdwg.mxu0
    %v931 = vrot.slane %v856, 5
    %v933 = vadd.f32 %v148, %v931
    %v934 = vxor.u32 %v933, 2147483648
    %v935 = vmul.f32 %v934, 1.442695
    %v936 = vpow.pop %v935
    %v937 = vadd.f32 %v936, 1.0
    %v938 = vrcp.pop %v937
    %v939 = vmul.f32 1.0, %v938
    %v941 = vrot.slane %v858, 5
    %v943 = vadd.f32 %v150, %v941
    %v944 = vxor.u32 %v943, 2147483648
    %v945 = vmul.f32 %v944, 1.442695
    %v946 = vpow.pop %v945
    %v947 = vadd.f32 %v946, 1.0
    %v948 = vrcp.pop %v947
    %v949 = vmul.f32 1.0, %v948
    %v950 = vadd.f32 %v927, %v222
    %v952 = vrot.slane %v950, 5
    %v954 = vmul.f32 %v939, %v952
    %v955 = vadd.f32 %v219, %v954
    %v956 = vtanh.pop %v955
    %v957 = vsub.f32 1.0, %v949
    %v958 = vmul.f32 %v957, %v956
    %v959 = vrot.slane %v785, 7
    %v961 = vmul.f32 %v949, %v959
    %v962 = vadd.f32 %v958, %v961
    %v964 = vrot.slane %v962, 3
    %966 = vmatprep.subr.mxu0 %v269
    %967 = vmatpush1.msra.mxu0 %v268
    %968 = vmatprep.subr.mxu0 %v266
    %969 = vmatpush1.msra.mxu0 %v265
    %970 = vmatprep.subr.mxu0 %v263
    %971 = vmatpush1.msra.mxu0 %v262
    %972 = vmatprep.subr.mxu0 %v260
    %973 = vmatpush1.msra.mxu0 %v259
    %974 = vmatprep.subr.mxu0 %v257
    %975 = vmatpush1.msra.mxu0 %v256
    %976 = vmatprep.subr.mxu0 %v254
    %977 = vmatpush1.msra.mxu0 %v253
    %978 = vmatprep.subr.mxu0 %v251
    %979 = vmatpush1.msra.mxu0 %v250
    %980 = vmatprep.subr.mxu0 %v248
    %981 = vmatpush1.msra.mxu0 %v247
    %982 = vmatprep.subr.mxu0 %v245
    %983 = vmatpush1.msra.mxu0 %v244
    %984 = vmatprep.subr.mxu0 %v242
    %985 = vmatpush1.msra.mxu0 %v241
    %986 = vmatprep.subr.mxu0 %v239
    %987 = vmatpush1.msra.mxu0 %v238
    %988 = vmatprep.subr.mxu0 %v236
    %989 = vmatpush1.msra.mxu0 %v235
    %990 = vmatprep.subr.mxu0 %v233
    %991 = vmatpush1.msra.mxu0 %v232
    %992 = vmatprep.subr.mxu0 %v230
    %993 = vmatpush1.msra.mxu0 %v229
    %994 = vmatprep.subr.mxu0 %v227
    %995 = vmatpush1.msra.mxu0 %v226
    %996 = vmatprep.subr.mxu0 %v224
    %997 = vmatpush1.msra.mxu0 %v223
    %998 = vmatprep.subr.mxu0 0.0
    %999 = vmatpush2.msra.mxu0 0.0
    %1000 = vmatprep.subr.mxu0 0.0
    %1001 = vmatpush2.msra.mxu0 0.0
    %1002 = vmatprep.subr.mxu0 0.0
    %1003 = vmatpush2.msra.mxu0 0.0
    %1004 = vmatprep.subr.mxu0 0.0
    %1005 = vmatpush2.msra.mxu0 0.0
    %1006 = vmatprep.subr.mxu0 0.0
    %1007 = vmatpush2.msra.mxu0 0.0
    %1008 = vmatprep.subr.mxu0 0.0
    %1009 = vmatpush2.msra.mxu0 0.0
    %1010 = vmatprep.subr.mxu0 0.0
    %1011 = vmatpush2.msra.mxu0 0.0
    %1012 = vmatprep.subr.mxu0 0.0
    %1013 = vmatpush2.msra.mxu0 0.0
    %1014 = vmatprep.subr.mxu0 0.0
    %1015 = vmatpush2.msra.mxu0 0.0
    %1016 = vmatprep.subr.mxu0 0.0
    %1017 = vmatpush2.msra.mxu0 0.0
    %1018 = vmatprep.subr.mxu0 0.0
    %1019 = vmatpush2.msra.mxu0 0.0
    %1020 = vmatprep.subr.mxu0 0.0
    %1021 = vmatpush2.msra.mxu0 0.0
    %1022 = vmatprep.subr.mxu0 0.0
    %1023 = vmatpush2.msra.mxu0 0.0
    %1024 = vmatprep.subr.mxu0 0.0
    %1025 = vmatpush2.msra.mxu0 0.0
    %1026 = vmatprep.subr.mxu0 0.0
    %1027 = vmatpush2.msra.mxu0 0.0
    %1028 = vmatprep.subr.mxu0 0.0
    %1029 = vmatpush2.msra.mxu0 0.0
    %1030 = vmatprep.mubr.f32.mxu0 0.0
    %1031 = vmatmul.mubr.f32.gmra.mxu0 %v964
    %v1032 = vpop.f32.mrf.mxu0
    %v1033 = vadd.f32 0.0, %v1032
    %v1034 = vpop.f32.mrf.mxu0
    %v1035 = vadd.f32 0.0, %v1034
    %1036 = vdwg.mxu0
    %1037 = vmatprep.subr.mxu0 0.0
    %1038 = vmatpush1.msra.mxu0 %v270
    %1039 = vmatprep.subr.mxu0 0.0
    %1040 = vmatpush1.msra.mxu0 %v267
    %1041 = vmatprep.subr.mxu0 0.0
    %1042 = vmatpush1.msra.mxu0 %v264
    %1043 = vmatprep.subr.mxu0 0.0
    %1044 = vmatpush1.msra.mxu0 %v261
    %1045 = vmatprep.subr.mxu0 0.0
    %1046 = vmatpush1.msra.mxu0 %v258
    %1047 = vmatprep.subr.mxu0 0.0
    %1048 = vmatpush1.msra.mxu0 %v255
    %1049 = vmatprep.subr.mxu0 0.0
    %1050 = vmatpush1.msra.mxu0 %v252
    %1051 = vmatprep.subr.mxu0 0.0
    %1052 = vmatpush1.msra.mxu0 %v249
    %1053 = vmatprep.subr.mxu0 0.0
    %1054 = vmatpush1.msra.mxu0 %v246
    %1055 = vmatprep.subr.mxu0 0.0
    %1056 = vmatpush1.msra.mxu0 %v243
    %1057 = vmatprep.subr.mxu0 0.0
    %1058 = vmatpush1.msra.mxu0 %v240
    %1059 = vmatprep.subr.mxu0 0.0
    %1060 = vmatpush1.msra.mxu0 %v237
    %1061 = vmatprep.subr.mxu0 0.0
    %1062 = vmatpush1.msra.mxu0 %v234
    %1063 = vmatprep.subr.mxu0 0.0
    %1064 = vmatpush1.msra.mxu0 %v231
    %1065 = vmatprep.subr.mxu0 0.0
    %1066 = vmatpush1.msra.mxu0 %v228
    %1067 = vmatprep.subr.mxu0 0.0
    %1068 = vmatpush1.msra.mxu0 %v225
    %1069 = vmatprep.subr.mxu0 0.0
    %1070 = vmatpush2.msra.mxu0 0.0
    %1071 = vmatprep.subr.mxu0 0.0
    %1072 = vmatpush2.msra.mxu0 0.0
    %1073 = vmatprep.subr.mxu0 0.0
    %1074 = vmatpush2.msra.mxu0 0.0
    %1075 = vmatprep.subr.mxu0 0.0
    %1076 = vmatpush2.msra.mxu0 0.0
    %1077 = vmatprep.subr.mxu0 0.0
    %1078 = vmatpush2.msra.mxu0 0.0
    %1079 = vmatprep.subr.mxu0 0.0
    %1080 = vmatpush2.msra.mxu0 0.0
    %1081 = vmatprep.subr.mxu0 0.0
    %1082 = vmatpush2.msra.mxu0 0.0
    %1083 = vmatprep.subr.mxu0 0.0
    %1084 = vmatpush2.msra.mxu0 0.0
    %1085 = vmatprep.subr.mxu0 0.0
    %1086 = vmatpush2.msra.mxu0 0.0
    %1087 = vmatprep.subr.mxu0 0.0
    %1088 = vmatpush2.msra.mxu0 0.0
    %1089 = vmatprep.subr.mxu0 0.0
    %1090 = vmatpush2.msra.mxu0 0.0
    %1091 = vmatprep.subr.mxu0 0.0
    %1092 = vmatpush2.msra.mxu0 0.0
    %1093 = vmatprep.subr.mxu0 0.0
    %1094 = vmatpush2.msra.mxu0 0.0
    %1095 = vmatprep.subr.mxu0 0.0
    %1096 = vmatpush2.msra.mxu0 0.0
    %1097 = vmatprep.subr.mxu0 0.0
    %1098 = vmatpush2.msra.mxu0 0.0
    %1099 = vmatprep.subr.mxu0 0.0
    %1100 = vmatpush2.msra.mxu0 0.0
    %1101 = vmatprep.mubr.f32.mxu0 0.0
    %1102 = vmatmul.mubr.f32.gmra.mxu0 %v964
    %v1103 = vpop.f32.mrf.mxu0
    %v1104 = vadd.f32 0.0, %v1103
    %v1105 = vpop.f32.mrf.mxu0
    %1106 = vdwg.mxu0
    %v1108 = vrot.slane %v1033, 4
    %v1110 = vadd.f32 %v148, %v1108
    %v1111 = vxor.u32 %v1110, 2147483648
    %v1112 = vmul.f32 %v1111, 1.442695
    %v1113 = vpow.pop %v1112
    %v1114 = vadd.f32 %v1113, 1.0
    %v1115 = vrcp.pop %v1114
    %v1116 = vmul.f32 1.0, %v1115
    %v1118 = vrot.slane %v1035, 4
    %v1120 = vadd.f32 %v150, %v1118
    %v1121 = vxor.u32 %v1120, 2147483648
    %v1122 = vmul.f32 %v1121, 1.442695
    %v1123 = vpow.pop %v1122
    %v1124 = vadd.f32 %v1123, 1.0
    %v1125 = vrcp.pop %v1124
    %v1126 = vmul.f32 1.0, %v1125
    %v1127 = vadd.f32 %v1104, %v222
    %v1129 = vrot.slane %v1127, 4
    %v1131 = vmul.f32 %v1116, %v1129
    %v1132 = vadd.f32 %v219, %v1131
    %v1133 = vtanh.pop %v1132
    %v1134 = vsub.f32 1.0, %v1126
    %v1135 = vmul.f32 %v1134, %v1133
    %v1136 = vrot.slane %v962, 7
    %v1138 = vmul.f32 %v1126, %v1136
    %v1139 = vadd.f32 %v1135, %v1138
    %v1141 = vrot.slane %v1139, 4
    %1143 = vmatprep.subr.mxu0 %v269
    %1144 = vmatpush1.msra.mxu0 %v268
    %1145 = vmatprep.subr.mxu0 %v266
    %1146 = vmatpush1.msra.mxu0 %v265
    %1147 = vmatprep.subr.mxu0 %v263
    %1148 = vmatpush1.msra.mxu0 %v262
    %1149 = vmatprep.subr.mxu0 %v260
    %1150 = vmatpush1.msra.mxu0 %v259
    %1151 = vmatprep.subr.mxu0 %v257
    %1152 = vmatpush1.msra.mxu0 %v256
    %1153 = vmatprep.subr.mxu0 %v254
    %1154 = vmatpush1.msra.mxu0 %v253
    %1155 = vmatprep.subr.mxu0 %v251
    %1156 = vmatpush1.msra.mxu0 %v250
    %1157 = vmatprep.subr.mxu0 %v248
    %1158 = vmatpush1.msra.mxu0 %v247
    %1159 = vmatprep.subr.mxu0 %v245
    %1160 = vmatpush1.msra.mxu0 %v244
    %1161 = vmatprep.subr.mxu0 %v242
    %1162 = vmatpush1.msra.mxu0 %v241
    %1163 = vmatprep.subr.mxu0 %v239
    %1164 = vmatpush1.msra.mxu0 %v238
    %1165 = vmatprep.subr.mxu0 %v236
    %1166 = vmatpush1.msra.mxu0 %v235
    %1167 = vmatprep.subr.mxu0 %v233
    %1168 = vmatpush1.msra.mxu0 %v232
    %1169 = vmatprep.subr.mxu0 %v230
    %1170 = vmatpush1.msra.mxu0 %v229
    %1171 = vmatprep.subr.mxu0 %v227
    %1172 = vmatpush1.msra.mxu0 %v226
    %1173 = vmatprep.subr.mxu0 %v224
    %1174 = vmatpush1.msra.mxu0 %v223
    %1175 = vmatprep.subr.mxu0 0.0
    %1176 = vmatpush2.msra.mxu0 0.0
    %1177 = vmatprep.subr.mxu0 0.0
    %1178 = vmatpush2.msra.mxu0 0.0
    %1179 = vmatprep.subr.mxu0 0.0
    %1180 = vmatpush2.msra.mxu0 0.0
    %1181 = vmatprep.subr.mxu0 0.0
    %1182 = vmatpush2.msra.mxu0 0.0
    %1183 = vmatprep.subr.mxu0 0.0
    %1184 = vmatpush2.msra.mxu0 0.0
    %1185 = vmatprep.subr.mxu0 0.0
    %1186 = vmatpush2.msra.mxu0 0.0
    %1187 = vmatprep.subr.mxu0 0.0
    %1188 = vmatpush2.msra.mxu0 0.0
    %1189 = vmatprep.subr.mxu0 0.0
    %1190 = vmatpush2.msra.mxu0 0.0
    %1191 = vmatprep.subr.mxu0 0.0
    %1192 = vmatpush2.msra.mxu0 0.0
    %1193 = vmatprep.subr.mxu0 0.0
    %1194 = vmatpush2.msra.mxu0 0.0
    %1195 = vmatprep.subr.mxu0 0.0
    %1196 = vmatpush2.msra.mxu0 0.0
    %1197 = vmatprep.subr.mxu0 0.0
    %1198 = vmatpush2.msra.mxu0 0.0
    %1199 = vmatprep.subr.mxu0 0.0
    %1200 = vmatpush2.msra.mxu0 0.0
    %1201 = vmatprep.subr.mxu0 0.0
    %1202 = vmatpush2.msra.mxu0 0.0
    %1203 = vmatprep.subr.mxu0 0.0
    %1204 = vmatpush2.msra.mxu0 0.0
    %1205 = vmatprep.subr.mxu0 0.0
    %1206 = vmatpush2.msra.mxu0 0.0
    %1207 = vmatprep.mubr.f32.mxu0 0.0
    %1208 = vmatmul.mubr.f32.gmra.mxu0 %v1141
    %v1209 = vpop.f32.mrf.mxu0
    %v1210 = vadd.f32 0.0, %v1209
    %v1211 = vpop.f32.mrf.mxu0
    %v1212 = vadd.f32 0.0, %v1211
    %1213 = vdwg.mxu0
    %1214 = vmatprep.subr.mxu0 0.0
    %1215 = vmatpush1.msra.mxu0 %v270
    %1216 = vmatprep.subr.mxu0 0.0
    %1217 = vmatpush1.msra.mxu0 %v267
    %1218 = vmatprep.subr.mxu0 0.0
    %1219 = vmatpush1.msra.mxu0 %v264
    %1220 = vmatprep.subr.mxu0 0.0
    %1221 = vmatpush1.msra.mxu0 %v261
    %1222 = vmatprep.subr.mxu0 0.0
    %1223 = vmatpush1.msra.mxu0 %v258
    %1224 = vmatprep.subr.mxu0 0.0
    %1225 = vmatpush1.msra.mxu0 %v255
    %1226 = vmatprep.subr.mxu0 0.0
    %1227 = vmatpush1.msra.mxu0 %v252
    %1228 = vmatprep.subr.mxu0 0.0
    %1229 = vmatpush1.msra.mxu0 %v249
    %1230 = vmatprep.subr.mxu0 0.0
    %1231 = vmatpush1.msra.mxu0 %v246
    %1232 = vmatprep.subr.mxu0 0.0
    %1233 = vmatpush1.msra.mxu0 %v243
    %1234 = vmatprep.subr.mxu0 0.0
    %1235 = vmatpush1.msra.mxu0 %v240
    %1236 = vmatprep.subr.mxu0 0.0
    %1237 = vmatpush1.msra.mxu0 %v237
    %1238 = vmatprep.subr.mxu0 0.0
    %1239 = vmatpush1.msra.mxu0 %v234
    %1240 = vmatprep.subr.mxu0 0.0
    %1241 = vmatpush1.msra.mxu0 %v231
    %1242 = vmatprep.subr.mxu0 0.0
    %1243 = vmatpush1.msra.mxu0 %v228
    %1244 = vmatprep.subr.mxu0 0.0
    %1245 = vmatpush1.msra.mxu0 %v225
    %1246 = vmatprep.subr.mxu0 0.0
    %1247 = vmatpush2.msra.mxu0 0.0
    %1248 = vmatprep.subr.mxu0 0.0
    %1249 = vmatpush2.msra.mxu0 0.0
    %1250 = vmatprep.subr.mxu0 0.0
    %1251 = vmatpush2.msra.mxu0 0.0
    %1252 = vmatprep.subr.mxu0 0.0
    %1253 = vmatpush2.msra.mxu0 0.0
    %1254 = vmatprep.subr.mxu0 0.0
    %1255 = vmatpush2.msra.mxu0 0.0
    %1256 = vmatprep.subr.mxu0 0.0
    %1257 = vmatpush2.msra.mxu0 0.0
    %1258 = vmatprep.subr.mxu0 0.0
    %1259 = vmatpush2.msra.mxu0 0.0
    %1260 = vmatprep.subr.mxu0 0.0
    %1261 = vmatpush2.msra.mxu0 0.0
    %1262 = vmatprep.subr.mxu0 0.0
    %1263 = vmatpush2.msra.mxu0 0.0
    %1264 = vmatprep.subr.mxu0 0.0
    %1265 = vmatpush2.msra.mxu0 0.0
    %1266 = vmatprep.subr.mxu0 0.0
    %1267 = vmatpush2.msra.mxu0 0.0
    %1268 = vmatprep.subr.mxu0 0.0
    %1269 = vmatpush2.msra.mxu0 0.0
    %1270 = vmatprep.subr.mxu0 0.0
    %1271 = vmatpush2.msra.mxu0 0.0
    %1272 = vmatprep.subr.mxu0 0.0
    %1273 = vmatpush2.msra.mxu0 0.0
    %1274 = vmatprep.subr.mxu0 0.0
    %1275 = vmatpush2.msra.mxu0 0.0
    %1276 = vmatprep.subr.mxu0 0.0
    %1277 = vmatpush2.msra.mxu0 0.0
    %1278 = vmatprep.mubr.f32.mxu0 0.0
    %1279 = vmatmul.mubr.f32.gmra.mxu0 %v1141
    %v1280 = vpop.f32.mrf.mxu0
    %v1281 = vadd.f32 0.0, %v1280
    %v1282 = vpop.f32.mrf.mxu0
    %1283 = vdwg.mxu0
    %v1285 = vrot.slane %v1210, 3
    %v1287 = vadd.f32 %v148, %v1285
    %v1288 = vxor.u32 %v1287, 2147483648
    %v1289 = vmul.f32 %v1288, 1.442695
    %v1290 = vpow.pop %v1289
    %v1291 = vadd.f32 %v1290, 1.0
    %v1292 = vrcp.pop %v1291
    %v1293 = vmul.f32 1.0, %v1292
    %v1295 = vrot.slane %v1212, 3
    %v1297 = vadd.f32 %v150, %v1295
    %v1298 = vxor.u32 %v1297, 2147483648
    %v1299 = vmul.f32 %v1298, 1.442695
    %v1300 = vpow.pop %v1299
    %v1301 = vadd.f32 %v1300, 1.0
    %v1302 = vrcp.pop %v1301
    %v1303 = vmul.f32 1.0, %v1302
    %v1304 = vadd.f32 %v1281, %v222
    %v1306 = vrot.slane %v1304, 3
    %v1308 = vmul.f32 %v1293, %v1306
    %v1309 = vadd.f32 %v219, %v1308
    %v1310 = vtanh.pop %v1309
    %v1311 = vsub.f32 1.0, %v1303
    %v1312 = vmul.f32 %v1311, %v1310
    %v1313 = vrot.slane %v1139, 7
    %v1315 = vmul.f32 %v1303, %v1313
    %v1316 = vadd.f32 %v1312, %v1315
    %v1318 = vrot.slane %v1316, 5
    %1320 = vmatprep.subr.mxu0 %v269
    %1321 = vmatpush1.msra.mxu0 %v268
    %1322 = vmatprep.subr.mxu0 %v266
    %1323 = vmatpush1.msra.mxu0 %v265
    %1324 = vmatprep.subr.mxu0 %v263
    %1325 = vmatpush1.msra.mxu0 %v262
    %1326 = vmatprep.subr.mxu0 %v260
    %1327 = vmatpush1.msra.mxu0 %v259
    %1328 = vmatprep.subr.mxu0 %v257
    %1329 = vmatpush1.msra.mxu0 %v256
    %1330 = vmatprep.subr.mxu0 %v254
    %1331 = vmatpush1.msra.mxu0 %v253
    %1332 = vmatprep.subr.mxu0 %v251
    %1333 = vmatpush1.msra.mxu0 %v250
    %1334 = vmatprep.subr.mxu0 %v248
    %1335 = vmatpush1.msra.mxu0 %v247
    %1336 = vmatprep.subr.mxu0 %v245
    %1337 = vmatpush1.msra.mxu0 %v244
    %1338 = vmatprep.subr.mxu0 %v242
    %1339 = vmatpush1.msra.mxu0 %v241
    %1340 = vmatprep.subr.mxu0 %v239
    %1341 = vmatpush1.msra.mxu0 %v238
    %1342 = vmatprep.subr.mxu0 %v236
    %1343 = vmatpush1.msra.mxu0 %v235
    %1344 = vmatprep.subr.mxu0 %v233
    %1345 = vmatpush1.msra.mxu0 %v232
    %1346 = vmatprep.subr.mxu0 %v230
    %1347 = vmatpush1.msra.mxu0 %v229
    %1348 = vmatprep.subr.mxu0 %v227
    %1349 = vmatpush1.msra.mxu0 %v226
    %1350 = vmatprep.subr.mxu0 %v224
    %1351 = vmatpush1.msra.mxu0 %v223
    %1352 = vmatprep.subr.mxu0 0.0
    %1353 = vmatpush2.msra.mxu0 0.0
    %1354 = vmatprep.subr.mxu0 0.0
    %1355 = vmatpush2.msra.mxu0 0.0
    %1356 = vmatprep.subr.mxu0 0.0
    %1357 = vmatpush2.msra.mxu0 0.0
    %1358 = vmatprep.subr.mxu0 0.0
    %1359 = vmatpush2.msra.mxu0 0.0
    %1360 = vmatprep.subr.mxu0 0.0
    %1361 = vmatpush2.msra.mxu0 0.0
    %1362 = vmatprep.subr.mxu0 0.0
    %1363 = vmatpush2.msra.mxu0 0.0
    %1364 = vmatprep.subr.mxu0 0.0
    %1365 = vmatpush2.msra.mxu0 0.0
    %1366 = vmatprep.subr.mxu0 0.0
    %1367 = vmatpush2.msra.mxu0 0.0
    %1368 = vmatprep.subr.mxu0 0.0
    %1369 = vmatpush2.msra.mxu0 0.0
    %1370 = vmatprep.subr.mxu0 0.0
    %1371 = vmatpush2.msra.mxu0 0.0
    %1372 = vmatprep.subr.mxu0 0.0
    %1373 = vmatpush2.msra.mxu0 0.0
    %1374 = vmatprep.subr.mxu0 0.0
    %1375 = vmatpush2.msra.mxu0 0.0
    %1376 = vmatprep.subr.mxu0 0.0
    %1377 = vmatpush2.msra.mxu0 0.0
    %1378 = vmatprep.subr.mxu0 0.0
    %1379 = vmatpush2.msra.mxu0 0.0
    %1380 = vmatprep.subr.mxu0 0.0
    %1381 = vmatpush2.msra.mxu0 0.0
    %1382 = vmatprep.subr.mxu0 0.0
    %1383 = vmatpush2.msra.mxu0 0.0
    %1384 = vmatprep.mubr.f32.mxu0 0.0
    %1385 = vmatmul.mubr.f32.gmra.mxu0 %v1318
    %v1386 = vpop.f32.mrf.mxu0
    %v1387 = vadd.f32 0.0, %v1386
    %v1388 = vpop.f32.mrf.mxu0
    %v1389 = vadd.f32 0.0, %v1388
    %1390 = vdwg.mxu0
    %1391 = vmatprep.subr.mxu0 0.0
    %1392 = vmatpush1.msra.mxu0 %v270
    %1393 = vmatprep.subr.mxu0 0.0
    %1394 = vmatpush1.msra.mxu0 %v267
    %1395 = vmatprep.subr.mxu0 0.0
    %1396 = vmatpush1.msra.mxu0 %v264
    %1397 = vmatprep.subr.mxu0 0.0
    %1398 = vmatpush1.msra.mxu0 %v261
    %1399 = vmatprep.subr.mxu0 0.0
    %1400 = vmatpush1.msra.mxu0 %v258
    %1401 = vmatprep.subr.mxu0 0.0
    %1402 = vmatpush1.msra.mxu0 %v255
    %1403 = vmatprep.subr.mxu0 0.0
    %1404 = vmatpush1.msra.mxu0 %v252
    %1405 = vmatprep.subr.mxu0 0.0
    %1406 = vmatpush1.msra.mxu0 %v249
    %1407 = vmatprep.subr.mxu0 0.0
    %1408 = vmatpush1.msra.mxu0 %v246
    %1409 = vmatprep.subr.mxu0 0.0
    %1410 = vmatpush1.msra.mxu0 %v243
    %1411 = vmatprep.subr.mxu0 0.0
    %1412 = vmatpush1.msra.mxu0 %v240
    %1413 = vmatprep.subr.mxu0 0.0
    %1414 = vmatpush1.msra.mxu0 %v237
    %1415 = vmatprep.subr.mxu0 0.0
    %1416 = vmatpush1.msra.mxu0 %v234
    %1417 = vmatprep.subr.mxu0 0.0
    %1418 = vmatpush1.msra.mxu0 %v231
    %1419 = vmatprep.subr.mxu0 0.0
    %1420 = vmatpush1.msra.mxu0 %v228
    %1421 = vmatprep.subr.mxu0 0.0
    %1422 = vmatpush1.msra.mxu0 %v225
    %1423 = vmatprep.subr.mxu0 0.0
    %1424 = vmatpush2.msra.mxu0 0.0
    %1425 = vmatprep.subr.mxu0 0.0
    %1426 = vmatpush2.msra.mxu0 0.0
    %1427 = vmatprep.subr.mxu0 0.0
    %1428 = vmatpush2.msra.mxu0 0.0
    %1429 = vmatprep.subr.mxu0 0.0
    %1430 = vmatpush2.msra.mxu0 0.0
    %1431 = vmatprep.subr.mxu0 0.0
    %1432 = vmatpush2.msra.mxu0 0.0
    %1433 = vmatprep.subr.mxu0 0.0
    %1434 = vmatpush2.msra.mxu0 0.0
    %1435 = vmatprep.subr.mxu0 0.0
    %1436 = vmatpush2.msra.mxu0 0.0
    %1437 = vmatprep.subr.mxu0 0.0
    %1438 = vmatpush2.msra.mxu0 0.0
    %1439 = vmatprep.subr.mxu0 0.0
    %1440 = vmatpush2.msra.mxu0 0.0
    %1441 = vmatprep.subr.mxu0 0.0
    %1442 = vmatpush2.msra.mxu0 0.0
    %1443 = vmatprep.subr.mxu0 0.0
    %1444 = vmatpush2.msra.mxu0 0.0
    %1445 = vmatprep.subr.mxu0 0.0
    %1446 = vmatpush2.msra.mxu0 0.0
    %1447 = vmatprep.subr.mxu0 0.0
    %1448 = vmatpush2.msra.mxu0 0.0
    %1449 = vmatprep.subr.mxu0 0.0
    %1450 = vmatpush2.msra.mxu0 0.0
    %1451 = vmatprep.subr.mxu0 0.0
    %1452 = vmatpush2.msra.mxu0 0.0
    %1453 = vmatprep.subr.mxu0 0.0
    %1454 = vmatpush2.msra.mxu0 0.0
    %1455 = vmatprep.mubr.f32.mxu0 0.0
    %1456 = vmatmul.mubr.f32.gmra.mxu0 %v1318
    %v1457 = vpop.f32.mrf.mxu0
    %v1458 = vadd.f32 0.0, %v1457
    %v1459 = vpop.f32.mrf.mxu0
    %1460 = vdwg.mxu0
    %v1462 = vrot.slane %v1387, 2
    %v1464 = vadd.f32 %v148, %v1462
    %v1465 = vxor.u32 %v1464, 2147483648
    %v1466 = vmul.f32 %v1465, 1.442695
    %v1467 = vpow.pop %v1466
    %v1468 = vadd.f32 %v1467, 1.0
    %v1469 = vrcp.pop %v1468
    %v1470 = vmul.f32 1.0, %v1469
    %v1472 = vrot.slane %v1389, 2
    %v1474 = vadd.f32 %v150, %v1472
    %v1475 = vxor.u32 %v1474, 2147483648
    %v1476 = vmul.f32 %v1475, 1.442695
    %v1477 = vpow.pop %v1476
    %v1478 = vadd.f32 %v1477, 1.0
    %v1479 = vrcp.pop %v1478
    %v1480 = vmul.f32 1.0, %v1479
    %v1481 = vadd.f32 %v1458, %v222
    %v1483 = vrot.slane %v1481, 2
    %v1485 = vmul.f32 %v1470, %v1483
    %v1486 = vadd.f32 %v219, %v1485
    %v1487 = vtanh.pop %v1486
    %v1488 = vsub.f32 1.0, %v1480
    %v1489 = vmul.f32 %v1488, %v1487
    %v1490 = vrot.slane %v1316, 7
    %v1492 = vmul.f32 %v1480, %v1490
    %v1493 = vadd.f32 %v1489, %v1492
    %v1495 = vrot.slane %v1493, 6
    %1497 = vmatprep.subr.mxu0 %v269
    %1498 = vmatpush1.msra.mxu0 %v268
    %1499 = vmatprep.subr.mxu0 %v266
    %1500 = vmatpush1.msra.mxu0 %v265
    %1501 = vmatprep.subr.mxu0 %v263
    %1502 = vmatpush1.msra.mxu0 %v262
    %1503 = vmatprep.subr.mxu0 %v260
    %1504 = vmatpush1.msra.mxu0 %v259
    %1505 = vmatprep.subr.mxu0 %v257
    %1506 = vmatpush1.msra.mxu0 %v256
    %1507 = vmatprep.subr.mxu0 %v254
    %1508 = vmatpush1.msra.mxu0 %v253
    %1509 = vmatprep.subr.mxu0 %v251
    %1510 = vmatpush1.msra.mxu0 %v250
    %1511 = vmatprep.subr.mxu0 %v248
    %1512 = vmatpush1.msra.mxu0 %v247
    %1513 = vmatprep.subr.mxu0 %v245
    %1514 = vmatpush1.msra.mxu0 %v244
    %1515 = vmatprep.subr.mxu0 %v242
    %1516 = vmatpush1.msra.mxu0 %v241
    %1517 = vmatprep.subr.mxu0 %v239
    %1518 = vmatpush1.msra.mxu0 %v238
    %1519 = vmatprep.subr.mxu0 %v236
    %1520 = vmatpush1.msra.mxu0 %v235
    %1521 = vmatprep.subr.mxu0 %v233
    %1522 = vmatpush1.msra.mxu0 %v232
    %1523 = vmatprep.subr.mxu0 %v230
    %1524 = vmatpush1.msra.mxu0 %v229
    %1525 = vmatprep.subr.mxu0 %v227
    %1526 = vmatpush1.msra.mxu0 %v226
    %1527 = vmatprep.subr.mxu0 %v224
    %1528 = vmatpush1.msra.mxu0 %v223
    %1529 = vmatprep.subr.mxu0 0.0
    %1530 = vmatpush2.msra.mxu0 0.0
    %1531 = vmatprep.subr.mxu0 0.0
    %1532 = vmatpush2.msra.mxu0 0.0
    %1533 = vmatprep.subr.mxu0 0.0
    %1534 = vmatpush2.msra.mxu0 0.0
    %1535 = vmatprep.subr.mxu0 0.0
    %1536 = vmatpush2.msra.mxu0 0.0
    %1537 = vmatprep.subr.mxu0 0.0
    %1538 = vmatpush2.msra.mxu0 0.0
    %1539 = vmatprep.subr.mxu0 0.0
    %1540 = vmatpush2.msra.mxu0 0.0
    %1541 = vmatprep.subr.mxu0 0.0
    %1542 = vmatpush2.msra.mxu0 0.0
    %1543 = vmatprep.subr.mxu0 0.0
    %1544 = vmatpush2.msra.mxu0 0.0
    %1545 = vmatprep.subr.mxu0 0.0
    %1546 = vmatpush2.msra.mxu0 0.0
    %1547 = vmatprep.subr.mxu0 0.0
    %1548 = vmatpush2.msra.mxu0 0.0
    %1549 = vmatprep.subr.mxu0 0.0
    %1550 = vmatpush2.msra.mxu0 0.0
    %1551 = vmatprep.subr.mxu0 0.0
    %1552 = vmatpush2.msra.mxu0 0.0
    %1553 = vmatprep.subr.mxu0 0.0
    %1554 = vmatpush2.msra.mxu0 0.0
    %1555 = vmatprep.subr.mxu0 0.0
    %1556 = vmatpush2.msra.mxu0 0.0
    %1557 = vmatprep.subr.mxu0 0.0
    %1558 = vmatpush2.msra.mxu0 0.0
    %1559 = vmatprep.subr.mxu0 0.0
    %1560 = vmatpush2.msra.mxu0 0.0
    %1561 = vmatprep.mubr.f32.mxu0 0.0
    %1562 = vmatmul.mubr.f32.gmra.mxu0 %v1495
    %v1563 = vpop.f32.mrf.mxu0
    %v1564 = vadd.f32 0.0, %v1563
    %v1565 = vpop.f32.mrf.mxu0
    %v1566 = vadd.f32 0.0, %v1565
    %1567 = vdwg.mxu0
    %1568 = vmatprep.subr.mxu0 0.0
    %1569 = vmatpush1.msra.mxu0 %v270
    %1570 = vmatprep.subr.mxu0 0.0
    %1571 = vmatpush1.msra.mxu0 %v267
    %1572 = vmatprep.subr.mxu0 0.0
    %1573 = vmatpush1.msra.mxu0 %v264
    %1574 = vmatprep.subr.mxu0 0.0
    %1575 = vmatpush1.msra.mxu0 %v261
    %1576 = vmatprep.subr.mxu0 0.0
    %1577 = vmatpush1.msra.mxu0 %v258
    %1578 = vmatprep.subr.mxu0 0.0
    %1579 = vmatpush1.msra.mxu0 %v255
    %1580 = vmatprep.subr.mxu0 0.0
    %1581 = vmatpush1.msra.mxu0 %v252
    %1582 = vmatprep.subr.mxu0 0.0
    %1583 = vmatpush1.msra.mxu0 %v249
    %1584 = vmatprep.subr.mxu0 0.0
    %1585 = vmatpush1.msra.mxu0 %v246
    %1586 = vmatprep.subr.mxu0 0.0
    %1587 = vmatpush1.msra.mxu0 %v243
    %1588 = vmatprep.subr.mxu0 0.0
    %1589 = vmatpush1.msra.mxu0 %v240
    %1590 = vmatprep.subr.mxu0 0.0
    %1591 = vmatpush1.msra.mxu0 %v237
    %1592 = vmatprep.subr.mxu0 0.0
    %1593 = vmatpush1.msra.mxu0 %v234
    %1594 = vmatprep.subr.mxu0 0.0
    %1595 = vmatpush1.msra.mxu0 %v231
    %1596 = vmatprep.subr.mxu0 0.0
    %1597 = vmatpush1.msra.mxu0 %v228
    %1598 = vmatprep.subr.mxu0 0.0
    %1599 = vmatpush1.msra.mxu0 %v225
    %1600 = vmatprep.subr.mxu0 0.0
    %1601 = vmatpush2.msra.mxu0 0.0
    %1602 = vmatprep.subr.mxu0 0.0
    %1603 = vmatpush2.msra.mxu0 0.0
    %1604 = vmatprep.subr.mxu0 0.0
    %1605 = vmatpush2.msra.mxu0 0.0
    %1606 = vmatprep.subr.mxu0 0.0
    %1607 = vmatpush2.msra.mxu0 0.0
    %1608 = vmatprep.subr.mxu0 0.0
    %1609 = vmatpush2.msra.mxu0 0.0
    %1610 = vmatprep.subr.mxu0 0.0
    %1611 = vmatpush2.msra.mxu0 0.0
    %1612 = vmatprep.subr.mxu0 0.0
    %1613 = vmatpush2.msra.mxu0 0.0
    %1614 = vmatprep.subr.mxu0 0.0
    %1615 = vmatpush2.msra.mxu0 0.0
    %1616 = vmatprep.subr.mxu0 0.0
    %1617 = vmatpush2.msra.mxu0 0.0
    %1618 = vmatprep.subr.mxu0 0.0
    %1619 = vmatpush2.msra.mxu0 0.0
    %1620 = vmatprep.subr.mxu0 0.0
    %1621 = vmatpush2.msra.mxu0 0.0
    %1622 = vmatprep.subr.mxu0 0.0
    %1623 = vmatpush2.msra.mxu0 0.0
    %1624 = vmatprep.subr.mxu0 0.0
    %1625 = vmatpush2.msra.mxu0 0.0
    %1626 = vmatprep.subr.mxu0 0.0
    %1627 = vmatpush2.msra.mxu0 0.0
    %1628 = vmatprep.subr.mxu0 0.0
    %1629 = vmatpush2.msra.mxu0 0.0
    %1630 = vmatprep.subr.mxu0 0.0
    %1631 = vmatpush2.msra.mxu0 0.0
    %1632 = vmatprep.mubr.f32.mxu0 0.0
    %1633 = vmatmul.mubr.f32.gmra.mxu0 %v1495
    %v1634 = vpop.f32.mrf.mxu0
    %v1635 = vadd.f32 0.0, %v1634
    %v1636 = vpop.f32.mrf.mxu0
    %1637 = vdwg.mxu0
    %v1639 = vrot.slane %v1564, 1
    %v1641 = vadd.f32 %v148, %v1639
    %v1642 = vxor.u32 %v1641, 2147483648
    %v1643 = vmul.f32 %v1642, 1.442695
    %v1644 = vpow.pop %v1643
    %v1645 = vadd.f32 %v1644, 1.0
    %v1646 = vrcp.pop %v1645
    %v1647 = vmul.f32 1.0, %v1646
    %v1649 = vrot.slane %v1566, 1
    %v1651 = vadd.f32 %v150, %v1649
    %v1652 = vxor.u32 %v1651, 2147483648
    %v1653 = vmul.f32 %v1652, 1.442695
    %v1654 = vpow.pop %v1653
    %v1655 = vadd.f32 %v1654, 1.0
    %v1656 = vrcp.pop %v1655
    %v1657 = vmul.f32 1.0, %v1656
    %v1658 = vadd.f32 %v1635, %v222
    %v1660 = vrot.slane %v1658, 1
    %v1662 = vmul.f32 %v1647, %v1660
    %v1663 = vadd.f32 %v219, %v1662
    %v1664 = vtanh.pop %v1663
    %v1665 = vsub.f32 1.0, %v1657
    %v1666 = vmul.f32 %v1665, %v1664
    %v1667 = vrot.slane %v1493, 7
    %v1669 = vmul.f32 %v1657, %v1667
    %v1670 = vadd.f32 %v1666, %v1669
    %v1671 = vld [vmem:[%s6] sm:$0xff]
    %v1672 = vld [vmem:[%s6 + $0x8] sm:$0xff]
    %v1673 = vld [vmem:[%s6 + $0x10] sm:$0xff]
    %v1674 = vld [vmem:[%s6 + $0x18] sm:$0xff]
    %v1675 = vld [vmem:[%s6 + $0x20] sm:$0xff]
    %v1676 = vld [vmem:[%s6 + $0x28] sm:$0xff]
    %v1677 = vld [vmem:[%s6 + $0x30] sm:$0xff]
    %v1678 = vld [vmem:[%s6 + $0x38] sm:$0xff]
    %v1679 = vld [vmem:[%s6 + $0x40] sm:$0xff]
    %v1680 = vld [vmem:[%s6 + $0x48] sm:$0xff]
    %v1681 = vld [vmem:[%s6 + $0x50] sm:$0xff]
    %v1682 = vld [vmem:[%s6 + $0x58] sm:$0xff]
    %v1683 = vld [vmem:[%s6 + $0x60] sm:$0xff]
    %v1684 = vld [vmem:[%s6 + $0x68] sm:$0xff]
    %v1685 = vld [vmem:[%s6 + $0x70] sm:$0xff]
    %v1686 = vld [vmem:[%s6 + $0x78] sm:$0xff]
    %v1687 = vld [vmem:[%s5] sm:$0x1]
    %v1688 = vld [vmem:[%s7] sm:$0xff]
    %v1689 = vld [vmem:[%s7 + $0x8] sm:$0xff]
    %v1690 = vld [vmem:[%s7 + $0x10] sm:$0xff]
    %v1691 = vld [vmem:[%s7 + $0x18] sm:$0xff]
    %v1693 = vsel %vm77, %v1687, 0
    %1695 = vmatprep.subr.mxu0 0.0
    %1696 = vmatpush1.msra.mxu0 0.0
    %1697 = vmatprep.subr.mxu0 0.0
    %1698 = vmatpush1.msra.mxu0 0.0
    %1699 = vmatprep.subr.mxu0 0.0
    %1700 = vmatpush1.msra.mxu0 0.0
    %1701 = vmatprep.subr.mxu0 0.0
    %1702 = vmatpush1.msra.mxu0 0.0
    %1703 = vmatprep.subr.mxu0 0.0
    %1704 = vmatpush1.msra.mxu0 0.0
    %1705 = vmatprep.subr.mxu0 0.0
    %1706 = vmatpush1.msra.mxu0 0.0
    %1707 = vmatprep.subr.mxu0 0.0
    %1708 = vmatpush1.msra.mxu0 0.0
    %1709 = vmatprep.subr.mxu0 0.0
    %1710 = vmatpush1.msra.mxu0 0.0
    %1711 = vmatprep.subr.mxu0 0.0
    %1712 = vmatpush1.msra.mxu0 0.0
    %1713 = vmatprep.subr.mxu0 0.0
    %1714 = vmatpush1.msra.mxu0 0.0
    %1715 = vmatprep.subr.mxu0 0.0
    %1716 = vmatpush1.msra.mxu0 0.0
    %1717 = vmatprep.subr.mxu0 0.0
    %1718 = vmatpush1.msra.mxu0 0.0
    %1719 = vmatprep.subr.mxu0 0.0
    %1720 = vmatpush1.msra.mxu0 %v1691
    %1721 = vmatprep.subr.mxu0 0.0
    %1722 = vmatpush1.msra.mxu0 %v1690
    %1723 = vmatprep.subr.mxu0 0.0
    %1724 = vmatpush1.msra.mxu0 %v1689
    %1725 = vmatprep.subr.mxu0 0.0
    %1726 = vmatpush1.msra.mxu0 %v1688
    %1727 = vmatprep.subr.mxu0 0.0
    %1728 = vmatpush2.msra.mxu0 0.0
    %1729 = vmatprep.subr.mxu0 0.0
    %1730 = vmatpush2.msra.mxu0 0.0
    %1731 = vmatprep.subr.mxu0 0.0
    %1732 = vmatpush2.msra.mxu0 0.0
    %1733 = vmatprep.subr.mxu0 0.0
    %1734 = vmatpush2.msra.mxu0 0.0
    %1735 = vmatprep.subr.mxu0 0.0
    %1736 = vmatpush2.msra.mxu0 0.0
    %1737 = vmatprep.subr.mxu0 0.0
    %1738 = vmatpush2.msra.mxu0 0.0
    %1739 = vmatprep.subr.mxu0 0.0
    %1740 = vmatpush2.msra.mxu0 0.0
    %1741 = vmatprep.subr.mxu0 0.0
    %1742 = vmatpush2.msra.mxu0 0.0
    %1743 = vmatprep.subr.mxu0 0.0
    %1744 = vmatpush2.msra.mxu0 0.0
    %1745 = vmatprep.subr.mxu0 0.0
    %1746 = vmatpush2.msra.mxu0 0.0
    %1747 = vmatprep.subr.mxu0 0.0
    %1748 = vmatpush2.msra.mxu0 0.0
    %1749 = vmatprep.subr.mxu0 0.0
    %1750 = vmatpush2.msra.mxu0 0.0
    %1751 = vmatprep.subr.mxu0 0.0
    %1752 = vmatpush2.msra.mxu0 0.0
    %1753 = vmatprep.subr.mxu0 0.0
    %1754 = vmatpush2.msra.mxu0 0.0
    %1755 = vmatprep.subr.mxu0 0.0
    %1756 = vmatpush2.msra.mxu0 0.0
    %1757 = vmatprep.subr.mxu0 0.0
    %1758 = vmatpush2.msra.mxu0 0.0
    %1759 = vmatprep.mubr.f32.mxu0 0.0
    %1760 = vmatmul.mubr.f32.gmra.mxu0 %v1693
    %v1761 = vpop.f32.mrf.mxu0
    %v1762 = vadd.f32 0.0, %v1761
    %v1763 = vpop.f32.mrf.mxu0
    %1764 = vdwg.mxu0
    %v1766 = vrot.slane %v1670, 7
    %1768 = vmatprep.subr.mxu0 0.0
    %1769 = vmatpush1.msra.mxu0 %v1686
    %1770 = vmatprep.subr.mxu0 0.0
    %1771 = vmatpush1.msra.mxu0 %v1685
    %1772 = vmatprep.subr.mxu0 0.0
    %1773 = vmatpush1.msra.mxu0 %v1684
    %1774 = vmatprep.subr.mxu0 0.0
    %1775 = vmatpush1.msra.mxu0 %v1683
    %1776 = vmatprep.subr.mxu0 0.0
    %1777 = vmatpush1.msra.mxu0 %v1682
    %1778 = vmatprep.subr.mxu0 0.0
    %1779 = vmatpush1.msra.mxu0 %v1681
    %1780 = vmatprep.subr.mxu0 0.0
    %1781 = vmatpush1.msra.mxu0 %v1680
    %1782 = vmatprep.subr.mxu0 0.0
    %1783 = vmatpush1.msra.mxu0 %v1679
    %1784 = vmatprep.subr.mxu0 0.0
    %1785 = vmatpush1.msra.mxu0 %v1678
    %1786 = vmatprep.subr.mxu0 0.0
    %1787 = vmatpush1.msra.mxu0 %v1677
    %1788 = vmatprep.subr.mxu0 0.0
    %1789 = vmatpush1.msra.mxu0 %v1676
    %1790 = vmatprep.subr.mxu0 0.0
    %1791 = vmatpush1.msra.mxu0 %v1675
    %1792 = vmatprep.subr.mxu0 0.0
    %1793 = vmatpush1.msra.mxu0 %v1674
    %1794 = vmatprep.subr.mxu0 0.0
    %1795 = vmatpush1.msra.mxu0 %v1673
    %1796 = vmatprep.subr.mxu0 0.0
    %1797 = vmatpush1.msra.mxu0 %v1672
    %1798 = vmatprep.subr.mxu0 0.0
    %1799 = vmatpush1.msra.mxu0 %v1671
    %1800 = vmatprep.subr.mxu0 0.0
    %1801 = vmatpush2.msra.mxu0 0.0
    %1802 = vmatprep.subr.mxu0 0.0
    %1803 = vmatpush2.msra.mxu0 0.0
    %1804 = vmatprep.subr.mxu0 0.0
    %1805 = vmatpush2.msra.mxu0 0.0
    %1806 = vmatprep.subr.mxu0 0.0
    %1807 = vmatpush2.msra.mxu0 0.0
    %1808 = vmatprep.subr.mxu0 0.0
    %1809 = vmatpush2.msra.mxu0 0.0
    %1810 = vmatprep.subr.mxu0 0.0
    %1811 = vmatpush2.msra.mxu0 0.0
    %1812 = vmatprep.subr.mxu0 0.0
    %1813 = vmatpush2.msra.mxu0 0.0
    %1814 = vmatprep.subr.mxu0 0.0
    %1815 = vmatpush2.msra.mxu0 0.0
    %1816 = vmatprep.subr.mxu0 0.0
    %1817 = vmatpush2.msra.mxu0 0.0
    %1818 = vmatprep.subr.mxu0 0.0
    %1819 = vmatpush2.msra.mxu0 0.0
    %1820 = vmatprep.subr.mxu0 0.0
    %1821 = vmatpush2.msra.mxu0 0.0
    %1822 = vmatprep.subr.mxu0 0.0
    %1823 = vmatpush2.msra.mxu0 0.0
    %1824 = vmatprep.subr.mxu0 0.0
    %1825 = vmatpush2.msra.mxu0 0.0
    %1826 = vmatprep.subr.mxu0 0.0
    %1827 = vmatpush2.msra.mxu0 0.0
    %1828 = vmatprep.subr.mxu0 0.0
    %1829 = vmatpush2.msra.mxu0 0.0
    %1830 = vmatprep.subr.mxu0 0.0
    %1831 = vmatpush2.msra.mxu0 0.0
    %1832 = vmatprep.mubr.f32.mxu0 0.0
    %1833 = vmatmul.mubr.f32.gmra.mxu0 %v1766
    %v1834 = vpop.f32.mrf.mxu0
    %v1835 = vadd.f32 %v1762, %v1834
    %v1836 = vpop.f32.mrf.mxu0
    %1837 = vdwg.mxu0
    %v1838 = vld [vmem:[%s8] sm:$0x1]
    %v1839 = vadd.f32 %v1835, %v1838
    %vm1840 = vcmask 253952
    %1841 = vst.msk [vmem:[#allocation5] sm:$0x1] %vm1840, %v1839
    // Predicated region
    $region42: #{tpu_custom_call.1} parent=1 // pred_check
      _
    $region43: #{tpu_custom_call.1} parent=1 // pred_check_branch
      %1843 = sbr.rel (0) target = $region45
    $region44: #{tpu_custom_call.1} parent=1 // pred_region
      %s1845 = ssub.s32 16, 16
      %1846 = vsyncadd [#allocation4], %s1845
      %s1848 = sshll.u32 [#allocation5], 4
      %s1849 = int_to_ptr.vmem [resolvable:$true] %s1848
      %1851 = dma.vmem_to_hbm [thread:$0]  %s1849, 16, %s9, [#allocation4]
    $region45: #{tpu_custom_call.1} parent=1 // pred_fallthru
      _
    // Predicated region
    $region46: #{tpu_custom_call.1} parent=1 // pred_check
      _
    $region47: #{tpu_custom_call.1} parent=1 // pred_check_branch
      %1853 = sbr.rel (0) target = $region49
    $region48: #{tpu_custom_call.1} parent=1 // pred_region
      %1854 = dma.done [#allocation4], 16
    $region49: #{tpu_custom_call.1} parent=1 // pred_fallthru
      _
    %1855 = vsyncpa [#allocation3], 1
    %1856 = vsyncpa [#allocation4], 1

</llo_original>
